<compile_context>
chip_gen: v7x
topology: tpu7x:2x2x1
jax: 0.10.0
libtpu: 0.0.40
codegen_flags: <defaults>
</compile_context>

<pallas_src>
import functools
import math

import jax
import jax.numpy as jnp
from jax.experimental import pallas as pl
from jax.experimental.pallas import tpu as pltpu


# ---------------------------------------------------------------------------
# helpers
# ---------------------------------------------------------------------------
def _round_up(x, m):
    return ((x + m - 1) // m) * m


def _largest_tile(dim_pad, target, unit=128):
    """Largest multiple of `unit` that divides dim_pad and is <= max(target, unit)."""
    best = unit
    t = unit
    limit = min(max(target, unit), dim_pad)
    while t <= limit:
        if dim_pad % t == 0:
            best = t
        t += unit
    return best


def _vmem_capacity_bytes():
    try:
        return int(pltpu.get_tpu_info().vmem_capacity_bytes)
    except Exception:
        return 64 * 1024 * 1024  # conservative (v7x per-TensorCore)


# ---------------------------------------------------------------------------
# kernels
# ---------------------------------------------------------------------------
def _fr_resident_kernel(x_ref, wt_ref, b_ref, o_ref, *, precision):
    # Whole (in, out) W^T tile resident in VMEM; single MXU pass per M tile.
    o_ref[...] = (
        jnp.dot(
            x_ref[...],
            wt_ref[...],
            preferred_element_type=jnp.float32,
            precision=precision,
        )
        + b_ref[...]
    ).astype(o_ref.dtype)


def _fr_tiled_kernel(x_ref, wt_ref, b_ref, o_ref, *, precision):
    # Grid = (M, N, K); K is innermost.  o_ref's block index ignores k, so it
    # is resident across the K loop and used directly as the f32 accumulator.
    k = pl.program_id(2)

    @pl.when(k == 0)
    def _init():
        o_ref[...] = jnp.broadcast_to(
            b_ref[...].astype(jnp.float32), o_ref.shape
        )

    o_ref[...] += jnp.dot(
        x_ref[...],
        wt_ref[...],
        preferred_element_type=jnp.float32,
        precision=precision,
    )


# ---------------------------------------------------------------------------
# wrapper
# ---------------------------------------------------------------------------
def prepare_feature_regression_params(W, b):
    """Fold the eye(out,in) mask into W, transpose to (in, out) and zero-pad to
    lane-aligned shapes.  Weights are static across calls, so cache this."""
    out_size, in_size = W.shape
    in_pad = _round_up(in_size, 128)
    out_pad = _round_up(out_size, 128)

    n = min(out_size, in_size)
    idx = jnp.arange(n)
    wT = W.T.at[idx, idx].set(0)  # zero where input index == output index
    wT_p = jnp.zeros((in_pad, out_pad), W.dtype).at[:in_size, :out_size].set(wT)
    b_p = jnp.zeros((1, out_pad), b.dtype).at[0, :out_size].set(b)
    return wT_p, b_p


def feature_regression(x, W, b, *, params=None, tm=None, tn=None, tk=None,
                       tiny_fallback=True, force_tiled=False):
    """x: (B, in), W: (out, in), b: (out,) -> (B, out)  ==  x @ (W*m).T + b."""
    B, in_size = x.shape
    out_size = W.shape[0]
    dtype = x.dtype

    # Deliberate f32 MXU path (multi-pass) when both operands are f32.
    f32_inputs = (x.dtype == jnp.float32) and (W.dtype == jnp.float32)
    precision = jax.lax.Precision.HIGHEST if f32_inputs else None

    # Tiny problems: lane padding to 128 would make the kernel mostly padded
    # compute; plain XLA GEMM wins on every generation.
    if tiny_fallback and not force_tiled and in_size < 128 and out_size < 128:
        n = min(out_size, in_size)
        idx = jnp.arange(n)
        Wm = W.at[idx, idx].set(0)
        return (jnp.dot(x, Wm.T, precision=precision) + b).astype(dtype)

    if params is None:
        params = prepare_feature_regression_params(W, b)
    wT_p, b_p = params
    in_pad, out_pad = wT_p.shape

    vmem_cap = _vmem_capacity_bytes()
    vmem_budget = int(vmem_cap * 0.75)          # generation-aware scoped limit
    w_bytes = wT_p.size * wT_p.dtype.itemsize
    resident_limit = min(vmem_cap // 6, 24 * 1024 * 1024)
    use_resident = (not force_tiled) and (w_bytes <= resident_limit)

    x_itemsize = jnp.dtype(x.dtype).itemsize
    o_itemsize = jnp.dtype(dtype).itemsize

    # ---------------- resident path: W^T DMA'd once, no K loop ----------------
    if use_resident:
        tm_r = tm if tm is not None else (512 if B >= 512 else _round_up(B, 8))
        tm_r = _round_up(max(tm_r, 8), 8)

        def _need(tm_):
            # resident W + bias + double-buffered x / out tiles
            return (w_bytes + 2 * b_p.size * b_p.dtype.itemsize
                    + 2 * tm_ * in_pad * x_itemsize
                    + 2 * tm_ * out_pad * o_itemsize)

        while tm_r > 8 and _need(tm_r) > vmem_budget:
            tm_r = max(8, _round_up(tm_r // 2, 8))

        B_pad = _round_up(B, tm_r)
        if B_pad != B or in_pad != in_size:
            x_p = jnp.zeros((B_pad, in_pad), x.dtype).at[:B, :in_size].set(x)
        else:
            x_p = x

        kernel = functools.partial(_fr_resident_kernel, precision=precision)
        out = pl.pallas_call(
            kernel,
            out_shape=jax.ShapeDtypeStruct((B_pad, out_pad), dtype),
            grid_spec=pltpu.PrefetchScalarGridSpec(
                num_scalar_prefetch=0,
                grid=(B_pad // tm_r,),
                in_specs=[
                    pl.BlockSpec((tm_r, in_pad), lambda i: (i, 0)),       # x tile
                    pl.BlockSpec((in_pad, out_pad), lambda i: (0, 0)),    # W^T, resident
                    pl.BlockSpec((1, out_pad), lambda i: (0, 0)),         # bias, resident
                ],
                out_specs=pl.BlockSpec((tm_r, out_pad), lambda i: (i, 0)),
            ),
            compiler_params=pltpu.CompilerParams(
                dimension_semantics=("parallel",),
                vmem_limit_bytes=vmem_budget,
            ),
        )(x_p, wT_p, b_p)
        return out[:B, :out_size]

    # ---------------- tiled path: grid (M, N, K), output is the accumulator ---
    if tm is None:
        tm = 512 if B >= 512 else _round_up(B, 8)
    tm = _round_up(max(tm, 8), 8)
    if tn is None:
        tn = _largest_tile(out_pad, 512)
    if tk is None:
        tk = _largest_tile(in_pad, 1024)
    # Keep both v7x TensorCores busy when B fits in a single M tile.
    if _round_up(B, tm) // tm < 2 and out_pad // tn < 2 and out_pad >= 256:
        tn = _largest_tile(out_pad, out_pad // 2)

    B_pad = _round_up(B, tm)
    if B_pad != B or in_pad != in_size:
        x_p = jnp.zeros((B_pad, in_pad), x.dtype).at[:B, :in_size].set(x)
    else:
        x_p = x

    grid = (B_pad // tm, out_pad // tn, in_pad // tk)
    kernel = functools.partial(_fr_tiled_kernel, precision=precision)

    out = pl.pallas_call(
        kernel,
        out_shape=jax.ShapeDtypeStruct((B_pad, out_pad), jnp.float32),
        grid_spec=pltpu.PrefetchScalarGridSpec(
            num_scalar_prefetch=0,
            grid=grid,
            in_specs=[
                pl.BlockSpec((tm, tk), lambda i, j, k: (i, k)),   # x tile
                pl.BlockSpec((tk, tn), lambda i, j, k: (k, j)),   # W^T tile
                pl.BlockSpec((1, tn), lambda i, j, k: (0, j)),    # bias (resident over K)
            ],
            out_specs=pl.BlockSpec((tm, tn), lambda i, j, k: (i, j)),
        ),
        compiler_params=pltpu.CompilerParams(
            dimension_semantics=("parallel", "parallel", "arbitrary"),
            vmem_limit_bytes=vmem_budget,
        ),
    )(x_p, wT_p, b_p)

    return out[:B, :out_size].astype(dtype)


# ---------------------------------------------------------------------------
# init matching reset_parameters(): U(-stdv, stdv), stdv = 1/sqrt(out_size)
# ---------------------------------------------------------------------------
def init_feature_regression_params(key, input_size, out_size=None):
    if out_size is None:
        out_size = input_size
    stdv = 1.0 / math.sqrt(out_size)
    kw, kb = jax.random.split(key)
    W = jax.random.uniform(kw, (out_size, input_size), jnp.float32, -stdv, stdv)
    b = jax.random.uniform(kb, (out_size,), jnp.float32, -stdv, stdv)
    return W, b


def _reference(x, W, b):
    out_size, in_size = W.shape
    m = jnp.ones((out_size, in_size), W.dtype) - jnp.eye(
        out_size, in_size, dtype=W.dtype
    )
    return jnp.dot(x, (W * m).T, precision=jax.lax.Precision.HIGHEST) + b


if __name__ == "__main__":
    key = jax.random.PRNGKey(0)
    k1, k2, k3, k4 = jax.random.split(key, 4)

    # 1) resident fast path, rectangular (out != in) so eye(out,in) is exercised.
    B1, in1, out1 = 64, 384, 256
    x1 = jax.random.normal(k1, (B1, in1), jnp.float32)
    W1, b1 = init_feature_regression_params(k2, in1, out1)
    y1 = jax.block_until_ready(feature_regression(x1, W1, b1))
    assert y1.shape == (B1, out1)
    assert jnp.allclose(y1, _reference(x1, W1, b1), atol=1e-4, rtol=1e-4), \
        "resident-path mismatch vs reference"

    # 2) general tiled path (forced at small shapes) -> exercises K accumulation
    #    with bias-initialized output accumulator.
    B2, in2, out2 = 96, 384, 256
    x2 = jax.random.normal(k3, (B2, in2), jnp.float32)
    W2, b2 = init_feature_regression_params(k4, in2, out2)
    y2 = jax.block_until_ready(
        feature_regression(x2, W2, b2, force_tiled=True, tm=96, tn=128, tk=128)
    )
    assert y2.shape == (B2, out2)
    assert jnp.allclose(y2, _reference(x2, W2, b2), atol=1e-4, rtol=1e-4), \
        "tiled-path mismatch vs reference"

    # 3) tiny-shape fallback (plain XLA GEMM, no lane padding waste).
    B3, in3, out3 = 8, 32, 32
    x3 = jax.random.normal(k1, (B3, in3), jnp.float32)
    W3, b3 = init_feature_regression_params(k2, in3, out3)
    y3 = jax.block_until_ready(feature_regression(x3, W3, b3))
    assert y3.shape == (B3, out3)
    assert jnp.allclose(y3, _reference(x3, W3, b3), atol=1e-4, rtol=1e-4), \
        "tiny-fallback mismatch vs reference"

    print("KERNEL_OK")
</pallas_src>

<mosaic_0001>
module attributes {stable_mosaic.version = 11 : i64} {
  func.func @_fr_resident_kernel(%arg0: i32, %arg1: memref<64x384xf32, #tpu.memory_space<vmem>>, %arg2: memref<384x256xf32, #tpu.memory_space<vmem>>, %arg3: memref<1x256xf32, #tpu.memory_space<vmem>>, %arg4: memref<64x256xf32, #tpu.memory_space<vmem>>) attributes {dimension_semantics = [#tpu.dimension_semantics<parallel>], iteration_bounds = array<i64: 1>, scalar_prefetch = 0 : i64, scratch_operands = 0 : i64, tpu.core_type = #tpu.core_type<tc>, window_params = [{transform_indices = @transform_0, window_bounds = array<i64: 64, 384>}, {pipeline_mode = #tpu.pipeline_mode<synchronous>, transform_indices = @transform_1, window_bounds = array<i64: 384, 256>}, {pipeline_mode = #tpu.pipeline_mode<synchronous>, transform_indices = @transform_2, window_bounds = array<i64: 1, 256>}, {transform_indices = @transform_3, window_bounds = array<i64: 64, 256>}]} {
    %c0 = arith.constant 0 : index
    %c0_0 = arith.constant 0 : index
    %0 = vector.load %arg1[%c0, %c0_0] : memref<64x384xf32, #tpu.memory_space<vmem>>, vector<64x384xf32>
    %c0_1 = arith.constant 0 : index
    %c0_2 = arith.constant 0 : index
    %1 = vector.load %arg2[%c0_1, %c0_2] : memref<384x256xf32, #tpu.memory_space<vmem>>, vector<384x256xf32>
    %cst = arith.constant dense<0.000000e+00> : vector<64x256xf32>
    %2 = tpu.matmul %0, %1, %cst {dimension_numbers = #tpu.dot_dimension_numbers<[1], [0], [0], [1], [0, 0, 1, 1], [], []>, precision = #tpu.contract_precision<fp32>} : vector<64x384xf32>, vector<384x256xf32>, vector<64x256xf32> -> vector<64x256xf32>
    %c0_3 = arith.constant 0 : index
    %c0_4 = arith.constant 0 : index
    %3 = vector.load %arg3[%c0_3, %c0_4] : memref<1x256xf32, #tpu.memory_space<vmem>>, vector<1x256xf32>
    %4 = vector.broadcast %3 : vector<1x256xf32> to vector<64x256xf32>
    %5 = arith.addf %2, %4 : vector<64x256xf32>
    %c0_5 = arith.constant 0 : index
    %c0_6 = arith.constant 0 : index
    %6 = vector.load %arg4[%c0_5, %c0_6] : memref<64x256xf32, #tpu.memory_space<vmem>>, vector<64x256xf32>
    tpu.vector_store %arg4[%c0_5, %c0_6], %5 {strides = array<i32>} : memref<64x256xf32, #tpu.memory_space<vmem>>, vector<64x256xf32>,
    return
  }
  func.func @transform_0(%arg0: i32) -> (i32, i32) {
    %c0_i32 = arith.constant 0 : i32
    %c0_i32_0 = arith.constant 0 : i32
    return %arg0, %c0_i32 : i32, i32
  }
  func.func @transform_1(%arg0: i32) -> (i32, i32) {
    %c0_i32 = arith.constant 0 : i32
    %c0_i32_0 = arith.constant 0 : i32
    %c0_i32_1 = arith.constant 0 : i32
    return %c0_i32, %c0_i32_0 : i32, i32
  }
  func.func @transform_2(%arg0: i32) -> (i32, i32) {
    %c0_i32 = arith.constant 0 : i32
    %c0_i32_0 = arith.constant 0 : i32
    %c0_i32_1 = arith.constant 0 : i32
    return %c0_i32, %c0_i32_0 : i32, i32
  }
  func.func @transform_3(%arg0: i32) -> (i32, i32) {
    %c0_i32 = arith.constant 0 : i32
    %c0_i32_0 = arith.constant 0 : i32
    return %arg0, %c0_i32 : i32, i32
  }
}

</mosaic_0001>

<llo_original>
// kernel: tpu_custom_call.1
$region0: #{tpu_custom_call.1}
  #allocation0 [shape = 'u32[]', space=smem, size = 0x4, offset = 0x4, fixed_abs, tag = 'smem constant byte address 0x4 - core index']
  #allocation1 [shape = 'u32[144,128]{1,0:T(1,128)}', space=vmem, size = 0x12000, scoped, tag = 'internal scratch']
  %s0 = inlined_call_operand.hbm [shape: f32[64,384], index: 0, kind: input, shape index: {}]
  %s1 = inlined_call_operand.hbm [shape: f32[384,256], index: 1, kind: input, shape index: {}]
  %s2 = inlined_call_operand.vmem [shape: f32[1,256], index: 2, kind: input, shape index: {}]
  %s3 = inlined_call_operand.hbm [shape: f32[64,256], index: 3, kind: output, shape index: {}]
  %s4 = sld [smem:[#allocation0]]
  $region30: #{tpu_custom_call.1} parent=0
    _
  %s6 = ssub.s32 1, %s4
  %s7 = scalar_select 0, %s6, %s4
  $region1: #{tpu_custom_call.1} parent=0
    #allocation2 [shape = 'u8[98304]{0}', space=vmem, size = 0x18000, scoped, tag = 'input window, operand 0, single buffered']
    #allocation3 [shape = 's32[1]{0}', space=sflag, size = 0x4, scoped, tag = 'scoped memory for tpu_custom_call.1']
    #allocation4 [shape = 's32[1]{0}', space=sflag, size = 0x4, scoped, tag = 'scoped memory for tpu_custom_call.1']
    #allocation5 [shape = 'u8[393216]{0}', space=vmem, size = 0x60000, scoped, tag = 'input window, operand 1, single buffered']
    #allocation6 [shape = 's32[1]{0}', space=sflag, size = 0x4, scoped, tag = 'scoped memory for tpu_custom_call.1']
    #allocation7 [shape = 'u8[65536]{0}', space=vmem, size = 0x10000, scoped, tag = 'output window, operand 0, single buffered']
    %8 = vsyncpa [#allocation3], 0
    %9 = vsyncpa [#allocation6], 0
    %10 = vsyncpa [#allocation4], 0
    // Predicated region
    $region2: #{tpu_custom_call.1} parent=1 // pred_check
      _
    $region3: #{tpu_custom_call.1} parent=1 // pred_check_branch
      %12 = sbr.rel (0) target = $region5
    $region4: #{tpu_custom_call.1} parent=1 // pred_region
      %s14 = ssub.s32 3072, 3072
      %15 = vsyncadd [#allocation3], %s14
      %s16 = sshll.u32 [#allocation2], 4
      %s17 = int_to_ptr.vmem [resolvable:$true] %s16
      %22 = dma.hbm_to_vmem [thread:$0]  %s0, 3072, %s17, [#allocation3], 384, 384, 24
    $region5: #{tpu_custom_call.1} parent=1 // pred_fallthru
      _
    // Predicated region
    $region6: #{tpu_custom_call.1} parent=1 // pred_check
      _
    $region7: #{tpu_custom_call.1} parent=1 // pred_check_branch
      %24 = sbr.rel (0) target = $region9
    $region8: #{tpu_custom_call.1} parent=1 // pred_region
      %s26 = ssub.s32 12288, 12288
      %27 = vsyncadd [#allocation6], %s26
      %s28 = sshll.u32 [#allocation5], 4
      %s29 = int_to_ptr.vmem [resolvable:$true] %s28
      %34 = dma.hbm_to_vmem [thread:$0]  %s1, 12288, %s29, [#allocation6], 256, 256, 16
    $region9: #{tpu_custom_call.1} parent=1 // pred_fallthru
      _
    // Predicated region
    $region10: #{tpu_custom_call.1} parent=1 // pred_check
      _
    $region11: #{tpu_custom_call.1} parent=1 // pred_check_branch
      %36 = sbr.rel (0) target = $region13
    $region12: #{tpu_custom_call.1} parent=1 // pred_region
      _
    $region13: #{tpu_custom_call.1} parent=1 // pred_fallthru
      _
    // Predicated region
    $region14: #{tpu_custom_call.1} parent=1 // pred_check
      _
    $region15: #{tpu_custom_call.1} parent=1 // pred_check_branch
      %38 = sbr.rel (0) target = $region17
    $region16: #{tpu_custom_call.1} parent=1 // pred_region
      %39 = dma.done [#allocation3], 3072
    $region17: #{tpu_custom_call.1} parent=1 // pred_fallthru
      _
    // Predicated region
    $region18: #{tpu_custom_call.1} parent=1 // pred_check
      _
    $region19: #{tpu_custom_call.1} parent=1 // pred_check_branch
      %41 = sbr.rel (0) target = $region21
    $region20: #{tpu_custom_call.1} parent=1 // pred_region
      %42 = dma.done [#allocation6], 12288
    $region21: #{tpu_custom_call.1} parent=1 // pred_fallthru
      _
    %v43 = vld [vmem:[#allocation2] sm:$0xff]
    %v44 = vld [vmem:[#allocation2 + $0x8] sm:$0xff]
    %v45 = vld [vmem:[#allocation2 + $0x10] sm:$0xff]
    %v46 = vld [vmem:[#allocation2 + $0x18] sm:$0xff]
    %v47 = vld [vmem:[#allocation2 + $0x20] sm:$0xff]
    %v48 = vld [vmem:[#allocation2 + $0x28] sm:$0xff]
    %v49 = vld [vmem:[#allocation2 + $0x30] sm:$0xff]
    %v50 = vld [vmem:[#allocation2 + $0x38] sm:$0xff]
    %v51 = vld [vmem:[#allocation2 + $0x40] sm:$0xff]
    %v52 = vld [vmem:[#allocation2 + $0x48] sm:$0xff]
    %v53 = vld [vmem:[#allocation2 + $0x50] sm:$0xff]
    %v54 = vld [vmem:[#allocation2 + $0x58] sm:$0xff]
    %v55 = vld [vmem:[#allocation2 + $0x60] sm:$0xff]
    %v56 = vld [vmem:[#allocation2 + $0x68] sm:$0xff]
    %v57 = vld [vmem:[#allocation2 + $0x70] sm:$0xff]
    %v58 = vld [vmem:[#allocation2 + $0x78] sm:$0xff]
    %v59 = vld [vmem:[#allocation2 + $0x80] sm:$0xff]
    %v60 = vld [vmem:[#allocation2 + $0x88] sm:$0xff]
    %v61 = vld [vmem:[#allocation2 + $0x90] sm:$0xff]
    %v62 = vld [vmem:[#allocation2 + $0x98] sm:$0xff]
    %v63 = vld [vmem:[#allocation2 + $0xa0] sm:$0xff]
    %v64 = vld [vmem:[#allocation2 + $0xa8] sm:$0xff]
    %v65 = vld [vmem:[#allocation2 + $0xb0] sm:$0xff]
    %v66 = vld [vmem:[#allocation2 + $0xb8] sm:$0xff]
    %v67 = vld [vmem:[#allocation5] sm:$0xff]
    %v68 = vld [vmem:[#allocation5 + $0x8] sm:$0xff]
    %v69 = vld [vmem:[#allocation5 + $0x10] sm:$0xff]
    %v70 = vld [vmem:[#allocation5 + $0x18] sm:$0xff]
    %v71 = vld [vmem:[#allocation5 + $0x20] sm:$0xff]
    %v72 = vld [vmem:[#allocation5 + $0x28] sm:$0xff]
    %v73 = vld [vmem:[#allocation5 + $0x30] sm:$0xff]
    %v74 = vld [vmem:[#allocation5 + $0x38] sm:$0xff]
    %v75 = vld [vmem:[#allocation5 + $0x40] sm:$0xff]
    %v76 = vld [vmem:[#allocation5 + $0x48] sm:$0xff]
    %v77 = vld [vmem:[#allocation5 + $0x50] sm:$0xff]
    %v78 = vld [vmem:[#allocation5 + $0x58] sm:$0xff]
    %v79 = vld [vmem:[#allocation5 + $0x60] sm:$0xff]
    %v80 = vld [vmem:[#allocation5 + $0x68] sm:$0xff]
    %v81 = vld [vmem:[#allocation5 + $0x70] sm:$0xff]
    %v82 = vld [vmem:[#allocation5 + $0x78] sm:$0xff]
    %v83 = vld [vmem:[#allocation5 + $0x80] sm:$0xff]
    %v84 = vld [vmem:[#allocation5 + $0x88] sm:$0xff]
    %v85 = vld [vmem:[#allocation5 + $0x90] sm:$0xff]
    %v86 = vld [vmem:[#allocation5 + $0x98] sm:$0xff]
    %v87 = vld [vmem:[#allocation5 + $0xa0] sm:$0xff]
    %v88 = vld [vmem:[#allocation5 + $0xa8] sm:$0xff]
    %v89 = vld [vmem:[#allocation5 + $0xb0] sm:$0xff]
    %v90 = vld [vmem:[#allocation5 + $0xb8] sm:$0xff]
    %v91 = vld [vmem:[#allocation5 + $0xc0] sm:$0xff]
    %v92 = vld [vmem:[#allocation5 + $0xc8] sm:$0xff]
    %v93 = vld [vmem:[#allocation5 + $0xd0] sm:$0xff]
    %v94 = vld [vmem:[#allocation5 + $0xd8] sm:$0xff]
    %v95 = vld [vmem:[#allocation5 + $0xe0] sm:$0xff]
    %v96 = vld [vmem:[#allocation5 + $0xe8] sm:$0xff]
    %v97 = vld [vmem:[#allocation5 + $0xf0] sm:$0xff]
    %v98 = vld [vmem:[#allocation5 + $0xf8] sm:$0xff]
    %v99 = vld [vmem:[#allocation5 + $0x100] sm:$0xff]
    %v100 = vld [vmem:[#allocation5 + $0x108] sm:$0xff]
    %v101 = vld [vmem:[#allocation5 + $0x110] sm:$0xff]
    %v102 = vld [vmem:[#allocation5 + $0x118] sm:$0xff]
    %v103 = vld [vmem:[#allocation5 + $0x120] sm:$0xff]
    %v104 = vld [vmem:[#allocation5 + $0x128] sm:$0xff]
    %v105 = vld [vmem:[#allocation5 + $0x130] sm:$0xff]
    %v106 = vld [vmem:[#allocation5 + $0x138] sm:$0xff]
    %v107 = vld [vmem:[#allocation5 + $0x140] sm:$0xff]
    %v108 = vld [vmem:[#allocation5 + $0x148] sm:$0xff]
    %v109 = vld [vmem:[#allocation5 + $0x150] sm:$0xff]
    %v110 = vld [vmem:[#allocation5 + $0x158] sm:$0xff]
    %v111 = vld [vmem:[#allocation5 + $0x160] sm:$0xff]
    %v112 = vld [vmem:[#allocation5 + $0x168] sm:$0xff]
    %v113 = vld [vmem:[#allocation5 + $0x170] sm:$0xff]
    %v114 = vld [vmem:[#allocation5 + $0x178] sm:$0xff]
    %v115 = vld [vmem:[#allocation5 + $0x180] sm:$0xff]
    %v116 = vld [vmem:[#allocation5 + $0x188] sm:$0xff]
    %v117 = vld [vmem:[#allocation5 + $0x190] sm:$0xff]
    %v118 = vld [vmem:[#allocation5 + $0x198] sm:$0xff]
    %v119 = vld [vmem:[#allocation5 + $0x1a0] sm:$0xff]
    %v120 = vld [vmem:[#allocation5 + $0x1a8] sm:$0xff]
    %v121 = vld [vmem:[#allocation5 + $0x1b0] sm:$0xff]
    %v122 = vld [vmem:[#allocation5 + $0x1b8] sm:$0xff]
    %v123 = vld [vmem:[#allocation5 + $0x1c0] sm:$0xff]
    %v124 = vld [vmem:[#allocation5 + $0x1c8] sm:$0xff]
    %v125 = vld [vmem:[#allocation5 + $0x1d0] sm:$0xff]
    %v126 = vld [vmem:[#allocation5 + $0x1d8] sm:$0xff]
    %v127 = vld [vmem:[#allocation5 + $0x1e0] sm:$0xff]
    %v128 = vld [vmem:[#allocation5 + $0x1e8] sm:$0xff]
    %v129 = vld [vmem:[#allocation5 + $0x1f0] sm:$0xff]
    %v130 = vld [vmem:[#allocation5 + $0x1f8] sm:$0xff]
    %v131 = vld [vmem:[#allocation5 + $0x200] sm:$0xff]
    %v132 = vld [vmem:[#allocation5 + $0x208] sm:$0xff]
    %v133 = vld [vmem:[#allocation5 + $0x210] sm:$0xff]
    %v134 = vld [vmem:[#allocation5 + $0x218] sm:$0xff]
    %v135 = vld [vmem:[#allocation5 + $0x220] sm:$0xff]
    %v136 = vld [vmem:[#allocation5 + $0x228] sm:$0xff]
    %v137 = vld [vmem:[#allocation5 + $0x230] sm:$0xff]
    %v138 = vld [vmem:[#allocation5 + $0x238] sm:$0xff]
    %v139 = vld [vmem:[#allocation5 + $0x240] sm:$0xff]
    %v140 = vld [vmem:[#allocation5 + $0x248] sm:$0xff]
    %v141 = vld [vmem:[#allocation5 + $0x250] sm:$0xff]
    %v142 = vld [vmem:[#allocation5 + $0x258] sm:$0xff]
    %v143 = vld [vmem:[#allocation5 + $0x260] sm:$0xff]
    %v144 = vld [vmem:[#allocation5 + $0x268] sm:$0xff]
    %v145 = vld [vmem:[#allocation5 + $0x270] sm:$0xff]
    %v146 = vld [vmem:[#allocation5 + $0x278] sm:$0xff]
    %v147 = vld [vmem:[#allocation5 + $0x280] sm:$0xff]
    %v148 = vld [vmem:[#allocation5 + $0x288] sm:$0xff]
    %v149 = vld [vmem:[#allocation5 + $0x290] sm:$0xff]
    %v150 = vld [vmem:[#allocation5 + $0x298] sm:$0xff]
    %v151 = vld [vmem:[#allocation5 + $0x2a0] sm:$0xff]
    %v152 = vld [vmem:[#allocation5 + $0x2a8] sm:$0xff]
    %v153 = vld [vmem:[#allocation5 + $0x2b0] sm:$0xff]
    %v154 = vld [vmem:[#allocation5 + $0x2b8] sm:$0xff]
    %v155 = vld [vmem:[#allocation5 + $0x2c0] sm:$0xff]
    %v156 = vld [vmem:[#allocation5 + $0x2c8] sm:$0xff]
    %v157 = vld [vmem:[#allocation5 + $0x2d0] sm:$0xff]
    %v158 = vld [vmem:[#allocation5 + $0x2d8] sm:$0xff]
    %v159 = vld [vmem:[#allocation5 + $0x2e0] sm:$0xff]
    %v160 = vld [vmem:[#allocation5 + $0x2e8] sm:$0xff]
    %v161 = vld [vmem:[#allocation5 + $0x2f0] sm:$0xff]
    %v162 = vld [vmem:[#allocation5 + $0x2f8] sm:$0xff]
    %v163 = vld [vmem:[%s2] sm:$0x3]
    %v165 = vlaneseq
    %v166 = vshrl.u32 %v165, 7
    %v167 = vsub.s32 0, %v166
    %v168 = vrot.slane %v163, %v167
    %v169 = vlaneseq
    %v170 = vshrl.u32 %v169, 7
    %v171 = vsub.s32 1, %v170
    %v172 = vrot.slane %v163, %v171
    %v175 = vand.u32 %v68, 4294901760
    %176 = vmatprep.subr.mxu0 %v175
    %v177 = vand.u32 %v67, 4294901760
    %178 = vmatpush1.msra.mxu0 %v177
    %v179 = vand.u32 %v70, 4294901760
    %180 = vmatprep.subr.mxu0 %v179
    %v181 = vand.u32 %v69, 4294901760
    %182 = vmatpush1.msra.mxu0 %v181
    %v183 = vand.u32 %v72, 4294901760
    %184 = vmatprep.subr.mxu0 %v183
    %v185 = vand.u32 %v71, 4294901760
    %186 = vmatpush1.msra.mxu0 %v185
    %v187 = vand.u32 %v74, 4294901760
    %188 = vmatprep.subr.mxu0 %v187
    %v189 = vand.u32 %v73, 4294901760
    %190 = vmatpush1.msra.mxu0 %v189
    %v191 = vand.u32 %v76, 4294901760
    %192 = vmatprep.subr.mxu0 %v191
    %v193 = vand.u32 %v75, 4294901760
    %194 = vmatpush1.msra.mxu0 %v193
    %v195 = vand.u32 %v78, 4294901760
    %196 = vmatprep.subr.mxu0 %v195
    %v197 = vand.u32 %v77, 4294901760
    %198 = vmatpush1.msra.mxu0 %v197
    %v199 = vand.u32 %v80, 4294901760
    %200 = vmatprep.subr.mxu0 %v199
    %v201 = vand.u32 %v79, 4294901760
    %202 = vmatpush1.msra.mxu0 %v201
    %v203 = vand.u32 %v82, 4294901760
    %204 = vmatprep.subr.mxu0 %v203
    %v205 = vand.u32 %v81, 4294901760
    %206 = vmatpush1.msra.mxu0 %v205
    %v207 = vand.u32 %v84, 4294901760
    %208 = vmatprep.subr.mxu0 %v207
    %v209 = vand.u32 %v83, 4294901760
    %210 = vmatpush1.msra.mxu0 %v209
    %v211 = vand.u32 %v86, 4294901760
    %212 = vmatprep.subr.mxu0 %v211
    %v213 = vand.u32 %v85, 4294901760
    %214 = vmatpush1.msra.mxu0 %v213
    %v215 = vand.u32 %v88, 4294901760
    %216 = vmatprep.subr.mxu0 %v215
    %v217 = vand.u32 %v87, 4294901760
    %218 = vmatpush1.msra.mxu0 %v217
    %v219 = vand.u32 %v90, 4294901760
    %220 = vmatprep.subr.mxu0 %v219
    %v221 = vand.u32 %v89, 4294901760
    %222 = vmatpush1.msra.mxu0 %v221
    %v223 = vand.u32 %v92, 4294901760
    %224 = vmatprep.subr.mxu0 %v223
    %v225 = vand.u32 %v91, 4294901760
    %226 = vmatpush1.msra.mxu0 %v225
    %v227 = vand.u32 %v94, 4294901760
    %228 = vmatprep.subr.mxu0 %v227
    %v229 = vand.u32 %v93, 4294901760
    %230 = vmatpush1.msra.mxu0 %v229
    %v231 = vand.u32 %v96, 4294901760
    %232 = vmatprep.subr.mxu0 %v231
    %v233 = vand.u32 %v95, 4294901760
    %234 = vmatpush1.msra.mxu0 %v233
    %v235 = vand.u32 %v98, 4294901760
    %236 = vmatprep.subr.mxu0 %v235
    %v237 = vand.u32 %v97, 4294901760
    %238 = vmatpush1.msra.mxu0 %v237
    %v239 = vand.u32 %v100, 4294901760
    %240 = vmatprep.subr.mxu0 %v239
    %v241 = vand.u32 %v99, 4294901760
    %242 = vmatpush1.msra.mxu0 %v241
    %v243 = vand.u32 %v102, 4294901760
    %244 = vmatprep.subr.mxu0 %v243
    %v245 = vand.u32 %v101, 4294901760
    %246 = vmatpush1.msra.mxu0 %v245
    %v247 = vand.u32 %v104, 4294901760
    %248 = vmatprep.subr.mxu0 %v247
    %v249 = vand.u32 %v103, 4294901760
    %250 = vmatpush1.msra.mxu0 %v249
    %v251 = vand.u32 %v106, 4294901760
    %252 = vmatprep.subr.mxu0 %v251
    %v253 = vand.u32 %v105, 4294901760
    %254 = vmatpush1.msra.mxu0 %v253
    %v255 = vand.u32 %v108, 4294901760
    %256 = vmatprep.subr.mxu0 %v255
    %v257 = vand.u32 %v107, 4294901760
    %258 = vmatpush1.msra.mxu0 %v257
    %v259 = vand.u32 %v110, 4294901760
    %260 = vmatprep.subr.mxu0 %v259
    %v261 = vand.u32 %v109, 4294901760
    %262 = vmatpush1.msra.mxu0 %v261
    %v263 = vand.u32 %v112, 4294901760
    %264 = vmatprep.subr.mxu0 %v263
    %v265 = vand.u32 %v111, 4294901760
    %266 = vmatpush1.msra.mxu0 %v265
    %v267 = vand.u32 %v114, 4294901760
    %268 = vmatprep.subr.mxu0 %v267
    %v269 = vand.u32 %v113, 4294901760
    %270 = vmatpush1.msra.mxu0 %v269
    %v271 = vand.u32 %v116, 4294901760
    %272 = vmatprep.subr.mxu0 %v271
    %v273 = vand.u32 %v115, 4294901760
    %274 = vmatpush1.msra.mxu0 %v273
    %v275 = vand.u32 %v118, 4294901760
    %276 = vmatprep.subr.mxu0 %v275
    %v277 = vand.u32 %v117, 4294901760
    %278 = vmatpush1.msra.mxu0 %v277
    %v279 = vand.u32 %v120, 4294901760
    %280 = vmatprep.subr.mxu0 %v279
    %v281 = vand.u32 %v119, 4294901760
    %282 = vmatpush1.msra.mxu0 %v281
    %v283 = vand.u32 %v122, 4294901760
    %284 = vmatprep.subr.mxu0 %v283
    %v285 = vand.u32 %v121, 4294901760
    %286 = vmatpush1.msra.mxu0 %v285
    %v287 = vand.u32 %v124, 4294901760
    %288 = vmatprep.subr.mxu0 %v287
    %v289 = vand.u32 %v123, 4294901760
    %290 = vmatpush1.msra.mxu0 %v289
    %v291 = vand.u32 %v126, 4294901760
    %292 = vmatprep.subr.mxu0 %v291
    %v293 = vand.u32 %v125, 4294901760
    %294 = vmatpush1.msra.mxu0 %v293
    %v295 = vand.u32 %v128, 4294901760
    %296 = vmatprep.subr.mxu0 %v295
    %v297 = vand.u32 %v127, 4294901760
    %298 = vmatpush1.msra.mxu0 %v297
    %v299 = vand.u32 %v130, 4294901760
    %300 = vmatprep.subr.mxu0 %v299
    %v301 = vand.u32 %v129, 4294901760
    %302 = vmatpush1.msra.mxu0 %v301
    %v303 = vand.u32 %v44, 4294901760
    %v304 = vsub.f32 %v44, %v303
    %v305 = vand.u32 %v304, 4294901760
    %v306 = vsub.f32 %v304, %v305
    %v307 = vand.u32 %v306, 4294901760
    %308 = vmatprep.mubr.f32.mxu0 %v307
    %v309 = vand.u32 %v43, 4294901760
    %v310 = vsub.f32 %v43, %v309
    %v311 = vand.u32 %v310, 4294901760
    %v312 = vsub.f32 %v310, %v311
    %v313 = vand.u32 %v312, 4294901760
    %314 = vmatmul.mubr.f32.gmra.mrb[0].mxu0 %v313
    %v315 = vpop.f32.mrb[0].mxu0
    %v316 = vadd.f32 %v168, %v315
    %v317 = vpop.f32.mrb[0].mxu0
    %v318 = vadd.f32 %v172, %v317
    %v319 = vand.u32 %v47, 4294901760
    %v320 = vsub.f32 %v47, %v319
    %v321 = vand.u32 %v320, 4294901760
    %v322 = vsub.f32 %v320, %v321
    %v323 = vand.u32 %v322, 4294901760
    %324 = vmatprep.mubr.f32.mxu0 %v323
    %v325 = vand.u32 %v46, 4294901760
    %v326 = vsub.f32 %v46, %v325
    %v327 = vand.u32 %v326, 4294901760
    %v328 = vsub.f32 %v326, %v327
    %v329 = vand.u32 %v328, 4294901760
    %330 = vmatmul.mubr.f32.gmra.mrb[0].mxu0 %v329
    %v331 = vpop.f32.mrb[0].mxu0
    %v332 = vadd.f32 %v168, %v331
    %v333 = vpop.f32.mrb[0].mxu0
    %v334 = vadd.f32 %v172, %v333
    %v335 = vand.u32 %v50, 4294901760
    %v336 = vsub.f32 %v50, %v335
    %v337 = vand.u32 %v336, 4294901760
    %v338 = vsub.f32 %v336, %v337
    %v339 = vand.u32 %v338, 4294901760
    %340 = vmatprep.mubr.f32.mxu0 %v339
    %v341 = vand.u32 %v49, 4294901760
    %v342 = vsub.f32 %v49, %v341
    %v343 = vand.u32 %v342, 4294901760
    %v344 = vsub.f32 %v342, %v343
    %v345 = vand.u32 %v344, 4294901760
    %346 = vmatmul.mubr.f32.gmra.mrb[0].mxu0 %v345
    %v347 = vpop.f32.mrb[0].mxu0
    %v348 = vadd.f32 %v168, %v347
    %v349 = vpop.f32.mrb[0].mxu0
    %v350 = vadd.f32 %v172, %v349
    %v351 = vand.u32 %v53, 4294901760
    %v352 = vsub.f32 %v53, %v351
    %v353 = vand.u32 %v352, 4294901760
    %v354 = vsub.f32 %v352, %v353
    %v355 = vand.u32 %v354, 4294901760
    %356 = vmatprep.mubr.f32.mxu0 %v355
    %v357 = vand.u32 %v52, 4294901760
    %v358 = vsub.f32 %v52, %v357
    %v359 = vand.u32 %v358, 4294901760
    %v360 = vsub.f32 %v358, %v359
    %v361 = vand.u32 %v360, 4294901760
    %362 = vmatmul.mubr.f32.gmra.mrb[0].mxu0 %v361
    %v363 = vpop.f32.mrb[0].mxu0
    %v364 = vadd.f32 %v168, %v363
    %v365 = vpop.f32.mrb[0].mxu0
    %v366 = vadd.f32 %v172, %v365
    %v367 = vand.u32 %v56, 4294901760
    %v368 = vsub.f32 %v56, %v367
    %v369 = vand.u32 %v368, 4294901760
    %v370 = vsub.f32 %v368, %v369
    %v371 = vand.u32 %v370, 4294901760
    %372 = vmatprep.mubr.f32.mxu0 %v371
    %v373 = vand.u32 %v55, 4294901760
    %v374 = vsub.f32 %v55, %v373
    %v375 = vand.u32 %v374, 4294901760
    %v376 = vsub.f32 %v374, %v375
    %v377 = vand.u32 %v376, 4294901760
    %378 = vmatmul.mubr.f32.gmra.mrb[0].mxu0 %v377
    %v379 = vpop.f32.mrb[0].mxu0
    %v380 = vadd.f32 %v168, %v379
    %v381 = vpop.f32.mrb[0].mxu0
    %v382 = vadd.f32 %v172, %v381
    %v383 = vand.u32 %v59, 4294901760
    %v384 = vsub.f32 %v59, %v383
    %v385 = vand.u32 %v384, 4294901760
    %v386 = vsub.f32 %v384, %v385
    %v387 = vand.u32 %v386, 4294901760
    %388 = vmatprep.mubr.f32.mxu0 %v387
    %v389 = vand.u32 %v58, 4294901760
    %v390 = vsub.f32 %v58, %v389
    %v391 = vand.u32 %v390, 4294901760
    %v392 = vsub.f32 %v390, %v391
    %v393 = vand.u32 %v392, 4294901760
    %394 = vmatmul.mubr.f32.gmra.mrb[0].mxu0 %v393
    %v395 = vpop.f32.mrb[0].mxu0
    %v396 = vadd.f32 %v168, %v395
    %v397 = vpop.f32.mrb[0].mxu0
    %v398 = vadd.f32 %v172, %v397
    %v399 = vand.u32 %v62, 4294901760
    %v400 = vsub.f32 %v62, %v399
    %v401 = vand.u32 %v400, 4294901760
    %v402 = vsub.f32 %v400, %v401
    %v403 = vand.u32 %v402, 4294901760
    %404 = vmatprep.mubr.f32.mxu0 %v403
    %v405 = vand.u32 %v61, 4294901760
    %v406 = vsub.f32 %v61, %v405
    %v407 = vand.u32 %v406, 4294901760
    %v408 = vsub.f32 %v406, %v407
    %v409 = vand.u32 %v408, 4294901760
    %410 = vmatmul.mubr.f32.gmra.mrb[0].mxu0 %v409
    %v411 = vpop.f32.mrb[0].mxu0
    %v412 = vadd.f32 %v168, %v411
    %v413 = vpop.f32.mrb[0].mxu0
    %v414 = vadd.f32 %v172, %v413
    %v415 = vand.u32 %v65, 4294901760
    %v416 = vsub.f32 %v65, %v415
    %v417 = vand.u32 %v416, 4294901760
    %v418 = vsub.f32 %v416, %v417
    %v419 = vand.u32 %v418, 4294901760
    %420 = vmatprep.mubr.f32.mxu0 %v419
    %v421 = vand.u32 %v64, 4294901760
    %v422 = vsub.f32 %v64, %v421
    %v423 = vand.u32 %v422, 4294901760
    %v424 = vsub.f32 %v422, %v423
    %v425 = vand.u32 %v424, 4294901760
    %426 = vmatmul.mubr.f32.gmra.mrb[0].mxu0 %v425
    %v427 = vpop.f32.mrb[0].mxu0
    %v428 = vadd.f32 %v168, %v427
    %v429 = vpop.f32.mrb[0].mxu0
    %v430 = vadd.f32 %v172, %v429
    %431 = vdwg.mxu0
    %v432 = vand.u32 %v68, 4294901760
    %v433 = vsub.f32 %v68, %v432
    %v434 = vand.u32 %v433, 4294901760
    %v435 = vsub.f32 %v433, %v434
    %v436 = vand.u32 %v435, 4294901760
    %437 = vmatprep.subr.mxu0 %v436
    %v438 = vand.u32 %v67, 4294901760
    %v439 = vsub.f32 %v67, %v438
    %v440 = vand.u32 %v439, 4294901760
    %v441 = vsub.f32 %v439, %v440
    %v442 = vand.u32 %v441, 4294901760
    %443 = vmatpush1.msra.mxu0 %v442
    %v444 = vand.u32 %v70, 4294901760
    %v445 = vsub.f32 %v70, %v444
    %v446 = vand.u32 %v445, 4294901760
    %v447 = vsub.f32 %v445, %v446
    %v448 = vand.u32 %v447, 4294901760
    %449 = vmatprep.subr.mxu0 %v448
    %v450 = vand.u32 %v69, 4294901760
    %v451 = vsub.f32 %v69, %v450
    %v452 = vand.u32 %v451, 4294901760
    %v453 = vsub.f32 %v451, %v452
    %v454 = vand.u32 %v453, 4294901760
    %455 = vmatpush1.msra.mxu0 %v454
    %v456 = vand.u32 %v72, 4294901760
    %v457 = vsub.f32 %v72, %v456
    %v458 = vand.u32 %v457, 4294901760
    %v459 = vsub.f32 %v457, %v458
    %v460 = vand.u32 %v459, 4294901760
    %461 = vmatprep.subr.mxu0 %v460
    %v462 = vand.u32 %v71, 4294901760
    %v463 = vsub.f32 %v71, %v462
    %v464 = vand.u32 %v463, 4294901760
    %v465 = vsub.f32 %v463, %v464
    %v466 = vand.u32 %v465, 4294901760
    %467 = vmatpush1.msra.mxu0 %v466
    %v468 = vand.u32 %v74, 4294901760
    %v469 = vsub.f32 %v74, %v468
    %v470 = vand.u32 %v469, 4294901760
    %v471 = vsub.f32 %v469, %v470
    %v472 = vand.u32 %v471, 4294901760
    %473 = vmatprep.subr.mxu0 %v472
    %v474 = vand.u32 %v73, 4294901760
    %v475 = vsub.f32 %v73, %v474
    %v476 = vand.u32 %v475, 4294901760
    %v477 = vsub.f32 %v475, %v476
    %v478 = vand.u32 %v477, 4294901760
    %479 = vmatpush1.msra.mxu0 %v478
    %v480 = vand.u32 %v76, 4294901760
    %v481 = vsub.f32 %v76, %v480
    %v482 = vand.u32 %v481, 4294901760
    %v483 = vsub.f32 %v481, %v482
    %v484 = vand.u32 %v483, 4294901760
    %485 = vmatprep.subr.mxu0 %v484
    %v486 = vand.u32 %v75, 4294901760
    %v487 = vsub.f32 %v75, %v486
    %v488 = vand.u32 %v487, 4294901760
    %v489 = vsub.f32 %v487, %v488
    %v490 = vand.u32 %v489, 4294901760
    %491 = vmatpush1.msra.mxu0 %v490
    %v492 = vand.u32 %v78, 4294901760
    %v493 = vsub.f32 %v78, %v492
    %v494 = vand.u32 %v493, 4294901760
    %v495 = vsub.f32 %v493, %v494
    %v496 = vand.u32 %v495, 4294901760
    %497 = vmatprep.subr.mxu0 %v496
    %v498 = vand.u32 %v77, 4294901760
    %v499 = vsub.f32 %v77, %v498
    %v500 = vand.u32 %v499, 4294901760
    %v501 = vsub.f32 %v499, %v500
    %v502 = vand.u32 %v501, 4294901760
    %503 = vmatpush1.msra.mxu0 %v502
    %v504 = vand.u32 %v80, 4294901760
    %v505 = vsub.f32 %v80, %v504
    %v506 = vand.u32 %v505, 4294901760
    %v507 = vsub.f32 %v505, %v506
    %v508 = vand.u32 %v507, 4294901760
    %509 = vmatprep.subr.mxu0 %v508
    %v510 = vand.u32 %v79, 4294901760
    %v511 = vsub.f32 %v79, %v510
    %v512 = vand.u32 %v511, 4294901760
    %v513 = vsub.f32 %v511, %v512
    %v514 = vand.u32 %v513, 4294901760
    %515 = vmatpush1.msra.mxu0 %v514
    %v516 = vand.u32 %v82, 4294901760
    %v517 = vsub.f32 %v82, %v516
    %v518 = vand.u32 %v517, 4294901760
    %v519 = vsub.f32 %v517, %v518
    %v520 = vand.u32 %v519, 4294901760
    %521 = vmatprep.subr.mxu0 %v520
    %v522 = vand.u32 %v81, 4294901760
    %v523 = vsub.f32 %v81, %v522
    %v524 = vand.u32 %v523, 4294901760
    %v525 = vsub.f32 %v523, %v524
    %v526 = vand.u32 %v525, 4294901760
    %527 = vmatpush1.msra.mxu0 %v526
    %v528 = vand.u32 %v84, 4294901760
    %v529 = vsub.f32 %v84, %v528
    %v530 = vand.u32 %v529, 4294901760
    %v531 = vsub.f32 %v529, %v530
    %v532 = vand.u32 %v531, 4294901760
    %533 = vmatprep.subr.mxu0 %v532
    %v534 = vand.u32 %v83, 4294901760
    %v535 = vsub.f32 %v83, %v534
    %v536 = vand.u32 %v535, 4294901760
    %v537 = vsub.f32 %v535, %v536
    %v538 = vand.u32 %v537, 4294901760
    %539 = vmatpush1.msra.mxu0 %v538
    %v540 = vand.u32 %v86, 4294901760
    %v541 = vsub.f32 %v86, %v540
    %v542 = vand.u32 %v541, 4294901760
    %v543 = vsub.f32 %v541, %v542
    %v544 = vand.u32 %v543, 4294901760
    %545 = vmatprep.subr.mxu0 %v544
    %v546 = vand.u32 %v85, 4294901760
    %v547 = vsub.f32 %v85, %v546
    %v548 = vand.u32 %v547, 4294901760
    %v549 = vsub.f32 %v547, %v548
    %v550 = vand.u32 %v549, 4294901760
    %551 = vmatpush1.msra.mxu0 %v550
    %v552 = vand.u32 %v88, 4294901760
    %v553 = vsub.f32 %v88, %v552
    %v554 = vand.u32 %v553, 4294901760
    %v555 = vsub.f32 %v553, %v554
    %v556 = vand.u32 %v555, 4294901760
    %557 = vmatprep.subr.mxu0 %v556
    %v558 = vand.u32 %v87, 4294901760
    %v559 = vsub.f32 %v87, %v558
    %v560 = vand.u32 %v559, 4294901760
    %v561 = vsub.f32 %v559, %v560
    %v562 = vand.u32 %v561, 4294901760
    %563 = vmatpush1.msra.mxu0 %v562
    %v564 = vand.u32 %v90, 4294901760
    %v565 = vsub.f32 %v90, %v564
    %v566 = vand.u32 %v565, 4294901760
    %v567 = vsub.f32 %v565, %v566
    %v568 = vand.u32 %v567, 4294901760
    %569 = vmatprep.subr.mxu0 %v568
    %v570 = vand.u32 %v89, 4294901760
    %v571 = vsub.f32 %v89, %v570
    %v572 = vand.u32 %v571, 4294901760
    %v573 = vsub.f32 %v571, %v572
    %v574 = vand.u32 %v573, 4294901760
    %575 = vmatpush1.msra.mxu0 %v574
    %v576 = vand.u32 %v92, 4294901760
    %v577 = vsub.f32 %v92, %v576
    %v578 = vand.u32 %v577, 4294901760
    %v579 = vsub.f32 %v577, %v578
    %v580 = vand.u32 %v579, 4294901760
    %581 = vmatprep.subr.mxu0 %v580
    %v582 = vand.u32 %v91, 4294901760
    %v583 = vsub.f32 %v91, %v582
    %v584 = vand.u32 %v583, 4294901760
    %v585 = vsub.f32 %v583, %v584
    %v586 = vand.u32 %v585, 4294901760
    %587 = vmatpush1.msra.mxu0 %v586
    %v588 = vand.u32 %v94, 4294901760
    %v589 = vsub.f32 %v94, %v588
    %v590 = vand.u32 %v589, 4294901760
    %v591 = vsub.f32 %v589, %v590
    %v592 = vand.u32 %v591, 4294901760
    %593 = vmatprep.subr.mxu0 %v592
    %v594 = vand.u32 %v93, 4294901760
    %v595 = vsub.f32 %v93, %v594
    %v596 = vand.u32 %v595, 4294901760
    %v597 = vsub.f32 %v595, %v596
    %v598 = vand.u32 %v597, 4294901760
    %599 = vmatpush1.msra.mxu0 %v598
    %v600 = vand.u32 %v96, 4294901760
    %v601 = vsub.f32 %v96, %v600
    %v602 = vand.u32 %v601, 4294901760
    %v603 = vsub.f32 %v601, %v602
    %v604 = vand.u32 %v603, 4294901760
    %605 = vmatprep.subr.mxu0 %v604
    %v606 = vand.u32 %v95, 4294901760
    %v607 = vsub.f32 %v95, %v606
    %v608 = vand.u32 %v607, 4294901760
    %v609 = vsub.f32 %v607, %v608
    %v610 = vand.u32 %v609, 4294901760
    %611 = vmatpush1.msra.mxu0 %v610
    %v612 = vand.u32 %v98, 4294901760
    %v613 = vsub.f32 %v98, %v612
    %v614 = vand.u32 %v613, 4294901760
    %v615 = vsub.f32 %v613, %v614
    %v616 = vand.u32 %v615, 4294901760
    %617 = vmatprep.subr.mxu0 %v616
    %v618 = vand.u32 %v97, 4294901760
    %v619 = vsub.f32 %v97, %v618
    %v620 = vand.u32 %v619, 4294901760
    %v621 = vsub.f32 %v619, %v620
    %v622 = vand.u32 %v621, 4294901760
    %623 = vmatpush1.msra.mxu0 %v622
    %v624 = vand.u32 %v100, 4294901760
    %v625 = vsub.f32 %v100, %v624
    %v626 = vand.u32 %v625, 4294901760
    %v627 = vsub.f32 %v625, %v626
    %v628 = vand.u32 %v627, 4294901760
    %629 = vmatprep.subr.mxu0 %v628
    %v630 = vand.u32 %v99, 4294901760
    %v631 = vsub.f32 %v99, %v630
    %v632 = vand.u32 %v631, 4294901760
    %v633 = vsub.f32 %v631, %v632
    %v634 = vand.u32 %v633, 4294901760
    %635 = vmatpush1.msra.mxu0 %v634
    %v636 = vand.u32 %v102, 4294901760
    %v637 = vsub.f32 %v102, %v636
    %v638 = vand.u32 %v637, 4294901760
    %v639 = vsub.f32 %v637, %v638
    %v640 = vand.u32 %v639, 4294901760
    %641 = vmatprep.subr.mxu0 %v640
    %v642 = vand.u32 %v101, 4294901760
    %v643 = vsub.f32 %v101, %v642
    %v644 = vand.u32 %v643, 4294901760
    %v645 = vsub.f32 %v643, %v644
    %v646 = vand.u32 %v645, 4294901760
    %647 = vmatpush1.msra.mxu0 %v646
    %v648 = vand.u32 %v104, 4294901760
    %v649 = vsub.f32 %v104, %v648
    %v650 = vand.u32 %v649, 4294901760
    %v651 = vsub.f32 %v649, %v650
    %v652 = vand.u32 %v651, 4294901760
    %653 = vmatprep.subr.mxu0 %v652
    %v654 = vand.u32 %v103, 4294901760
    %v655 = vsub.f32 %v103, %v654
    %v656 = vand.u32 %v655, 4294901760
    %v657 = vsub.f32 %v655, %v656
    %v658 = vand.u32 %v657, 4294901760
    %659 = vmatpush1.msra.mxu0 %v658
    %v660 = vand.u32 %v106, 4294901760
    %v661 = vsub.f32 %v106, %v660
    %v662 = vand.u32 %v661, 4294901760
    %v663 = vsub.f32 %v661, %v662
    %v664 = vand.u32 %v663, 4294901760
    %665 = vmatprep.subr.mxu0 %v664
    %v666 = vand.u32 %v105, 4294901760
    %v667 = vsub.f32 %v105, %v666
    %v668 = vand.u32 %v667, 4294901760
    %v669 = vsub.f32 %v667, %v668
    %v670 = vand.u32 %v669, 4294901760
    %671 = vmatpush1.msra.mxu0 %v670
    %v672 = vand.u32 %v108, 4294901760
    %v673 = vsub.f32 %v108, %v672
    %v674 = vand.u32 %v673, 4294901760
    %v675 = vsub.f32 %v673, %v674
    %v676 = vand.u32 %v675, 4294901760
    %677 = vmatprep.subr.mxu0 %v676
    %v678 = vand.u32 %v107, 4294901760
    %v679 = vsub.f32 %v107, %v678
    %v680 = vand.u32 %v679, 4294901760
    %v681 = vsub.f32 %v679, %v680
    %v682 = vand.u32 %v681, 4294901760
    %683 = vmatpush1.msra.mxu0 %v682
    %v684 = vand.u32 %v110, 4294901760
    %v685 = vsub.f32 %v110, %v684
    %v686 = vand.u32 %v685, 4294901760
    %v687 = vsub.f32 %v685, %v686
    %v688 = vand.u32 %v687, 4294901760
    %689 = vmatprep.subr.mxu0 %v688
    %v690 = vand.u32 %v109, 4294901760
    %v691 = vsub.f32 %v109, %v690
    %v692 = vand.u32 %v691, 4294901760
    %v693 = vsub.f32 %v691, %v692
    %v694 = vand.u32 %v693, 4294901760
    %695 = vmatpush1.msra.mxu0 %v694
    %v696 = vand.u32 %v112, 4294901760
    %v697 = vsub.f32 %v112, %v696
    %v698 = vand.u32 %v697, 4294901760
    %v699 = vsub.f32 %v697, %v698
    %v700 = vand.u32 %v699, 4294901760
    %701 = vmatprep.subr.mxu0 %v700
    %v702 = vand.u32 %v111, 4294901760
    %v703 = vsub.f32 %v111, %v702
    %v704 = vand.u32 %v703, 4294901760
    %v705 = vsub.f32 %v703, %v704
    %v706 = vand.u32 %v705, 4294901760
    %707 = vmatpush1.msra.mxu0 %v706
    %v708 = vand.u32 %v114, 4294901760
    %v709 = vsub.f32 %v114, %v708
    %v710 = vand.u32 %v709, 4294901760
    %v711 = vsub.f32 %v709, %v710
    %v712 = vand.u32 %v711, 4294901760
    %713 = vmatprep.subr.mxu0 %v712
    %v714 = vand.u32 %v113, 4294901760
    %v715 = vsub.f32 %v113, %v714
    %v716 = vand.u32 %v715, 4294901760
    %v717 = vsub.f32 %v715, %v716
    %v718 = vand.u32 %v717, 4294901760
    %719 = vmatpush1.msra.mxu0 %v718
    %v720 = vand.u32 %v116, 4294901760
    %v721 = vsub.f32 %v116, %v720
    %v722 = vand.u32 %v721, 4294901760
    %v723 = vsub.f32 %v721, %v722
    %v724 = vand.u32 %v723, 4294901760
    %725 = vmatprep.subr.mxu0 %v724
    %v726 = vand.u32 %v115, 4294901760
    %v727 = vsub.f32 %v115, %v726
    %v728 = vand.u32 %v727, 4294901760
    %v729 = vsub.f32 %v727, %v728
    %v730 = vand.u32 %v729, 4294901760
    %731 = vmatpush1.msra.mxu0 %v730
    %v732 = vand.u32 %v118, 4294901760
    %v733 = vsub.f32 %v118, %v732
    %v734 = vand.u32 %v733, 4294901760
    %v735 = vsub.f32 %v733, %v734
    %v736 = vand.u32 %v735, 4294901760
    %737 = vmatprep.subr.mxu0 %v736
    %v738 = vand.u32 %v117, 4294901760
    %v739 = vsub.f32 %v117, %v738
    %v740 = vand.u32 %v739, 4294901760
    %v741 = vsub.f32 %v739, %v740
    %v742 = vand.u32 %v741, 4294901760
    %743 = vmatpush1.msra.mxu0 %v742
    %v744 = vand.u32 %v120, 4294901760
    %v745 = vsub.f32 %v120, %v744
    %v746 = vand.u32 %v745, 4294901760
    %v747 = vsub.f32 %v745, %v746
    %v748 = vand.u32 %v747, 4294901760
    %749 = vmatprep.subr.mxu0 %v748
    %v750 = vand.u32 %v119, 4294901760
    %v751 = vsub.f32 %v119, %v750
    %v752 = vand.u32 %v751, 4294901760
    %v753 = vsub.f32 %v751, %v752
    %v754 = vand.u32 %v753, 4294901760
    %755 = vmatpush1.msra.mxu0 %v754
    %v756 = vand.u32 %v122, 4294901760
    %v757 = vsub.f32 %v122, %v756
    %v758 = vand.u32 %v757, 4294901760
    %v759 = vsub.f32 %v757, %v758
    %v760 = vand.u32 %v759, 4294901760
    %761 = vmatprep.subr.mxu0 %v760
    %v762 = vand.u32 %v121, 4294901760
    %v763 = vsub.f32 %v121, %v762
    %v764 = vand.u32 %v763, 4294901760
    %v765 = vsub.f32 %v763, %v764
    %v766 = vand.u32 %v765, 4294901760
    %767 = vmatpush1.msra.mxu0 %v766
    %v768 = vand.u32 %v124, 4294901760
    %v769 = vsub.f32 %v124, %v768
    %v770 = vand.u32 %v769, 4294901760
    %v771 = vsub.f32 %v769, %v770
    %v772 = vand.u32 %v771, 4294901760
    %773 = vmatprep.subr.mxu0 %v772
    %v774 = vand.u32 %v123, 4294901760
    %v775 = vsub.f32 %v123, %v774
    %v776 = vand.u32 %v775, 4294901760
    %v777 = vsub.f32 %v775, %v776
    %v778 = vand.u32 %v777, 4294901760
    %779 = vmatpush1.msra.mxu0 %v778
    %v780 = vand.u32 %v126, 4294901760
    %v781 = vsub.f32 %v126, %v780
    %v782 = vand.u32 %v781, 4294901760
    %v783 = vsub.f32 %v781, %v782
    %v784 = vand.u32 %v783, 4294901760
    %785 = vmatprep.subr.mxu0 %v784
    %v786 = vand.u32 %v125, 4294901760
    %v787 = vsub.f32 %v125, %v786
    %v788 = vand.u32 %v787, 4294901760
    %v789 = vsub.f32 %v787, %v788
    %v790 = vand.u32 %v789, 4294901760
    %791 = vmatpush1.msra.mxu0 %v790
    %v792 = vand.u32 %v128, 4294901760
    %v793 = vsub.f32 %v128, %v792
    %v794 = vand.u32 %v793, 4294901760
    %v795 = vsub.f32 %v793, %v794
    %v796 = vand.u32 %v795, 4294901760
    %797 = vmatprep.subr.mxu0 %v796
    %v798 = vand.u32 %v127, 4294901760
    %v799 = vsub.f32 %v127, %v798
    %v800 = vand.u32 %v799, 4294901760
    %v801 = vsub.f32 %v799, %v800
    %v802 = vand.u32 %v801, 4294901760
    %803 = vmatpush1.msra.mxu0 %v802
    %v804 = vand.u32 %v130, 4294901760
    %v805 = vsub.f32 %v130, %v804
    %v806 = vand.u32 %v805, 4294901760
    %v807 = vsub.f32 %v805, %v806
    %v808 = vand.u32 %v807, 4294901760
    %809 = vmatprep.subr.mxu0 %v808
    %v810 = vand.u32 %v129, 4294901760
    %v811 = vsub.f32 %v129, %v810
    %v812 = vand.u32 %v811, 4294901760
    %v813 = vsub.f32 %v811, %v812
    %v814 = vand.u32 %v813, 4294901760
    %815 = vmatpush1.msra.mxu0 %v814
    %v816 = vand.u32 %v44, 4294901760
    %817 = vmatprep.mubr.f32.mxu0 %v816
    %v818 = vand.u32 %v43, 4294901760
    %819 = vmatmul.mubr.f32.gmra.mrb[0].mxu0 %v818
    %v820 = vpop.f32.mrb[0].mxu0
    %v821 = vadd.f32 %v316, %v820
    %v822 = vpop.f32.mrb[0].mxu0
    %v823 = vadd.f32 %v318, %v822
    %v824 = vand.u32 %v47, 4294901760
    %825 = vmatprep.mubr.f32.mxu0 %v824
    %v826 = vand.u32 %v46, 4294901760
    %827 = vmatmul.mubr.f32.gmra.mrb[0].mxu0 %v826
    %v828 = vpop.f32.mrb[0].mxu0
    %v829 = vadd.f32 %v332, %v828
    %v830 = vpop.f32.mrb[0].mxu0
    %v831 = vadd.f32 %v334, %v830
    %v832 = vand.u32 %v50, 4294901760
    %833 = vmatprep.mubr.f32.mxu0 %v832
    %v834 = vand.u32 %v49, 4294901760
    %835 = vmatmul.mubr.f32.gmra.mrb[0].mxu0 %v834
    %v836 = vpop.f32.mrb[0].mxu0
    %v837 = vadd.f32 %v348, %v836
    %v838 = vpop.f32.mrb[0].mxu0
    %v839 = vadd.f32 %v350, %v838
    %v840 = vand.u32 %v53, 4294901760
    %841 = vmatprep.mubr.f32.mxu0 %v840
    %v842 = vand.u32 %v52, 4294901760
    %843 = vmatmul.mubr.f32.gmra.mrb[0].mxu0 %v842
    %v844 = vpop.f32.mrb[0].mxu0
    %v845 = vadd.f32 %v364, %v844
    %v846 = vpop.f32.mrb[0].mxu0
    %v847 = vadd.f32 %v366, %v846
    %v848 = vand.u32 %v56, 4294901760
    %849 = vmatprep.mubr.f32.mxu0 %v848
    %v850 = vand.u32 %v55, 4294901760
    %851 = vmatmul.mubr.f32.gmra.mrb[0].mxu0 %v850
    %v852 = vpop.f32.mrb[0].mxu0
    %v853 = vadd.f32 %v380, %v852
    %v854 = vpop.f32.mrb[0].mxu0
    %v855 = vadd.f32 %v382, %v854
    %v856 = vand.u32 %v59, 4294901760
    %857 = vmatprep.mubr.f32.mxu0 %v856
    %v858 = vand.u32 %v58, 4294901760
    %859 = vmatmul.mubr.f32.gmra.mrb[0].mxu0 %v858
    %v860 = vpop.f32.mrb[0].mxu0
    %v861 = vadd.f32 %v396, %v860
    %v862 = vpop.f32.mrb[0].mxu0
    %v863 = vadd.f32 %v398, %v862
    %v864 = vand.u32 %v62, 4294901760
    %865 = vmatprep.mubr.f32.mxu0 %v864
    %v866 = vand.u32 %v61, 4294901760
    %867 = vmatmul.mubr.f32.gmra.mrb[0].mxu0 %v866
    %v868 = vpop.f32.mrb[0].mxu0
    %v869 = vadd.f32 %v412, %v868
    %v870 = vpop.f32.mrb[0].mxu0
    %v871 = vadd.f32 %v414, %v870
    %v872 = vand.u32 %v65, 4294901760
    %873 = vmatprep.mubr.f32.mxu0 %v872
    %v874 = vand.u32 %v64, 4294901760
    %875 = vmatmul.mubr.f32.gmra.mrb[0].mxu0 %v874
    %v876 = vpop.f32.mrb[0].mxu0
    %v877 = vadd.f32 %v428, %v876
    %v878 = vpop.f32.mrb[0].mxu0
    %v879 = vadd.f32 %v430, %v878
    %880 = vdwg.mxu0
    %v881 = vand.u32 %v68, 4294901760
    %v882 = vsub.f32 %v68, %v881
    %883 = vmatprep.subr.mxu0 %v882
    %v884 = vand.u32 %v67, 4294901760
    %v885 = vsub.f32 %v67, %v884
    %886 = vmatpush1.msra.mxu0 %v885
    %v887 = vand.u32 %v70, 4294901760
    %v888 = vsub.f32 %v70, %v887
    %889 = vmatprep.subr.mxu0 %v888
    %v890 = vand.u32 %v69, 4294901760
    %v891 = vsub.f32 %v69, %v890
    %892 = vmatpush1.msra.mxu0 %v891
    %v893 = vand.u32 %v72, 4294901760
    %v894 = vsub.f32 %v72, %v893
    %895 = vmatprep.subr.mxu0 %v894
    %v896 = vand.u32 %v71, 4294901760
    %v897 = vsub.f32 %v71, %v896
    %898 = vmatpush1.msra.mxu0 %v897
    %v899 = vand.u32 %v74, 4294901760
    %v900 = vsub.f32 %v74, %v899
    %901 = vmatprep.subr.mxu0 %v900
    %v902 = vand.u32 %v73, 4294901760
    %v903 = vsub.f32 %v73, %v902
    %904 = vmatpush1.msra.mxu0 %v903
    %v905 = vand.u32 %v76, 4294901760
    %v906 = vsub.f32 %v76, %v905
    %907 = vmatprep.subr.mxu0 %v906
    %v908 = vand.u32 %v75, 4294901760
    %v909 = vsub.f32 %v75, %v908
    %910 = vmatpush1.msra.mxu0 %v909
    %v911 = vand.u32 %v78, 4294901760
    %v912 = vsub.f32 %v78, %v911
    %913 = vmatprep.subr.mxu0 %v912
    %v914 = vand.u32 %v77, 4294901760
    %v915 = vsub.f32 %v77, %v914
    %916 = vmatpush1.msra.mxu0 %v915
    %v917 = vand.u32 %v80, 4294901760
    %v918 = vsub.f32 %v80, %v917
    %919 = vmatprep.subr.mxu0 %v918
    %v920 = vand.u32 %v79, 4294901760
    %v921 = vsub.f32 %v79, %v920
    %922 = vmatpush1.msra.mxu0 %v921
    %v923 = vand.u32 %v82, 4294901760
    %v924 = vsub.f32 %v82, %v923
    %925 = vmatprep.subr.mxu0 %v924
    %v926 = vand.u32 %v81, 4294901760
    %v927 = vsub.f32 %v81, %v926
    %928 = vmatpush1.msra.mxu0 %v927
    %v929 = vand.u32 %v84, 4294901760
    %v930 = vsub.f32 %v84, %v929
    %931 = vmatprep.subr.mxu0 %v930
    %v932 = vand.u32 %v83, 4294901760
    %v933 = vsub.f32 %v83, %v932
    %934 = vmatpush1.msra.mxu0 %v933
    %v935 = vand.u32 %v86, 4294901760
    %v936 = vsub.f32 %v86, %v935
    %937 = vmatprep.subr.mxu0 %v936
    %v938 = vand.u32 %v85, 4294901760
    %v939 = vsub.f32 %v85, %v938
    %940 = vmatpush1.msra.mxu0 %v939
    %v941 = vand.u32 %v88, 4294901760
    %v942 = vsub.f32 %v88, %v941
    %943 = vmatprep.subr.mxu0 %v942
    %v944 = vand.u32 %v87, 4294901760
    %v945 = vsub.f32 %v87, %v944
    %946 = vmatpush1.msra.mxu0 %v945
    %v947 = vand.u32 %v90, 4294901760
    %v948 = vsub.f32 %v90, %v947
    %949 = vmatprep.subr.mxu0 %v948
    %v950 = vand.u32 %v89, 4294901760
    %v951 = vsub.f32 %v89, %v950
    %952 = vmatpush1.msra.mxu0 %v951
    %v953 = vand.u32 %v92, 4294901760
    %v954 = vsub.f32 %v92, %v953
    %955 = vmatprep.subr.mxu0 %v954
    %v956 = vand.u32 %v91, 4294901760
    %v957 = vsub.f32 %v91, %v956
    %958 = vmatpush1.msra.mxu0 %v957
    %v959 = vand.u32 %v94, 4294901760
    %v960 = vsub.f32 %v94, %v959
    %961 = vmatprep.subr.mxu0 %v960
    %v962 = vand.u32 %v93, 4294901760
    %v963 = vsub.f32 %v93, %v962
    %964 = vmatpush1.msra.mxu0 %v963
    %v965 = vand.u32 %v96, 4294901760
    %v966 = vsub.f32 %v96, %v965
    %967 = vmatprep.subr.mxu0 %v966
    %v968 = vand.u32 %v95, 4294901760
    %v969 = vsub.f32 %v95, %v968
    %970 = vmatpush1.msra.mxu0 %v969
    %v971 = vand.u32 %v98, 4294901760
    %v972 = vsub.f32 %v98, %v971
    %973 = vmatprep.subr.mxu0 %v972
    %v974 = vand.u32 %v97, 4294901760
    %v975 = vsub.f32 %v97, %v974
    %976 = vmatpush1.msra.mxu0 %v975
    %v977 = vand.u32 %v100, 4294901760
    %v978 = vsub.f32 %v100, %v977
    %979 = vmatprep.subr.mxu0 %v978
    %v980 = vand.u32 %v99, 4294901760
    %v981 = vsub.f32 %v99, %v980
    %982 = vmatpush1.msra.mxu0 %v981
    %v983 = vand.u32 %v102, 4294901760
    %v984 = vsub.f32 %v102, %v983
    %985 = vmatprep.subr.mxu0 %v984
    %v986 = vand.u32 %v101, 4294901760
    %v987 = vsub.f32 %v101, %v986
    %988 = vmatpush1.msra.mxu0 %v987
    %v989 = vand.u32 %v104, 4294901760
    %v990 = vsub.f32 %v104, %v989
    %991 = vmatprep.subr.mxu0 %v990
    %v992 = vand.u32 %v103, 4294901760
    %v993 = vsub.f32 %v103, %v992
    %994 = vmatpush1.msra.mxu0 %v993
    %v995 = vand.u32 %v106, 4294901760
    %v996 = vsub.f32 %v106, %v995
    %997 = vmatprep.subr.mxu0 %v996
    %v998 = vand.u32 %v105, 4294901760
    %v999 = vsub.f32 %v105, %v998
    %1000 = vmatpush1.msra.mxu0 %v999
    %v1001 = vand.u32 %v108, 4294901760
    %v1002 = vsub.f32 %v108, %v1001
    %1003 = vmatprep.subr.mxu0 %v1002
    %v1004 = vand.u32 %v107, 4294901760
    %v1005 = vsub.f32 %v107, %v1004
    %1006 = vmatpush1.msra.mxu0 %v1005
    %v1007 = vand.u32 %v110, 4294901760
    %v1008 = vsub.f32 %v110, %v1007
    %1009 = vmatprep.subr.mxu0 %v1008
    %v1010 = vand.u32 %v109, 4294901760
    %v1011 = vsub.f32 %v109, %v1010
    %1012 = vmatpush1.msra.mxu0 %v1011
    %v1013 = vand.u32 %v112, 4294901760
    %v1014 = vsub.f32 %v112, %v1013
    %1015 = vmatprep.subr.mxu0 %v1014
    %v1016 = vand.u32 %v111, 4294901760
    %v1017 = vsub.f32 %v111, %v1016
    %1018 = vmatpush1.msra.mxu0 %v1017
    %v1019 = vand.u32 %v114, 4294901760
    %v1020 = vsub.f32 %v114, %v1019
    %1021 = vmatprep.subr.mxu0 %v1020
    %v1022 = vand.u32 %v113, 4294901760
    %v1023 = vsub.f32 %v113, %v1022
    %1024 = vmatpush1.msra.mxu0 %v1023
    %v1025 = vand.u32 %v116, 4294901760
    %v1026 = vsub.f32 %v116, %v1025
    %1027 = vmatprep.subr.mxu0 %v1026
    %v1028 = vand.u32 %v115, 4294901760
    %v1029 = vsub.f32 %v115, %v1028
    %1030 = vmatpush1.msra.mxu0 %v1029
    %v1031 = vand.u32 %v118, 4294901760
    %v1032 = vsub.f32 %v118, %v1031
    %1033 = vmatprep.subr.mxu0 %v1032
    %v1034 = vand.u32 %v117, 4294901760
    %v1035 = vsub.f32 %v117, %v1034
    %1036 = vmatpush1.msra.mxu0 %v1035
    %v1037 = vand.u32 %v120, 4294901760
    %v1038 = vsub.f32 %v120, %v1037
    %1039 = vmatprep.subr.mxu0 %v1038
    %v1040 = vand.u32 %v119, 4294901760
    %v1041 = vsub.f32 %v119, %v1040
    %1042 = vmatpush1.msra.mxu0 %v1041
    %v1043 = vand.u32 %v122, 4294901760
    %v1044 = vsub.f32 %v122, %v1043
    %1045 = vmatprep.subr.mxu0 %v1044
    %v1046 = vand.u32 %v121, 4294901760
    %v1047 = vsub.f32 %v121, %v1046
    %1048 = vmatpush1.msra.mxu0 %v1047
    %v1049 = vand.u32 %v124, 4294901760
    %v1050 = vsub.f32 %v124, %v1049
    %1051 = vmatprep.subr.mxu0 %v1050
    %v1052 = vand.u32 %v123, 4294901760
    %v1053 = vsub.f32 %v123, %v1052
    %1054 = vmatpush1.msra.mxu0 %v1053
    %v1055 = vand.u32 %v126, 4294901760
    %v1056 = vsub.f32 %v126, %v1055
    %1057 = vmatprep.subr.mxu0 %v1056
    %v1058 = vand.u32 %v125, 4294901760
    %v1059 = vsub.f32 %v125, %v1058
    %1060 = vmatpush1.msra.mxu0 %v1059
    %v1061 = vand.u32 %v128, 4294901760
    %v1062 = vsub.f32 %v128, %v1061
    %1063 = vmatprep.subr.mxu0 %v1062
    %v1064 = vand.u32 %v127, 4294901760
    %v1065 = vsub.f32 %v127, %v1064
    %1066 = vmatpush1.msra.mxu0 %v1065
    %v1067 = vand.u32 %v130, 4294901760
    %v1068 = vsub.f32 %v130, %v1067
    %1069 = vmatprep.subr.mxu0 %v1068
    %v1070 = vand.u32 %v129, 4294901760
    %v1071 = vsub.f32 %v129, %v1070
    %1072 = vmatpush1.msra.mxu0 %v1071
    %v1073 = vand.u32 %v44, 4294901760
    %v1074 = vsub.f32 %v44, %v1073
    %1075 = vmatprep.mubr.f32.mxu0 %v1074
    %v1076 = vand.u32 %v43, 4294901760
    %v1077 = vsub.f32 %v43, %v1076
    %1078 = vmatmul.mubr.f32.gmra.mrb[0].mxu0 %v1077
    %v1079 = vpop.f32.mrb[0].mxu0
    %v1080 = vadd.f32 %v821, %v1079
    %v1081 = vpop.f32.mrb[0].mxu0
    %v1082 = vadd.f32 %v823, %v1081
    %v1083 = vand.u32 %v47, 4294901760
    %v1084 = vsub.f32 %v47, %v1083
    %1085 = vmatprep.mubr.f32.mxu0 %v1084
    %v1086 = vand.u32 %v46, 4294901760
    %v1087 = vsub.f32 %v46, %v1086
    %1088 = vmatmul.mubr.f32.gmra.mrb[0].mxu0 %v1087
    %v1089 = vpop.f32.mrb[0].mxu0
    %v1090 = vadd.f32 %v829, %v1089
    %v1091 = vpop.f32.mrb[0].mxu0
    %v1092 = vadd.f32 %v831, %v1091
    %v1093 = vand.u32 %v50, 4294901760
    %v1094 = vsub.f32 %v50, %v1093
    %1095 = vmatprep.mubr.f32.mxu0 %v1094
    %v1096 = vand.u32 %v49, 4294901760
    %v1097 = vsub.f32 %v49, %v1096
    %1098 = vmatmul.mubr.f32.gmra.mrb[0].mxu0 %v1097
    %v1099 = vpop.f32.mrb[0].mxu0
    %v1100 = vadd.f32 %v837, %v1099
    %v1101 = vpop.f32.mrb[0].mxu0
    %v1102 = vadd.f32 %v839, %v1101
    %v1103 = vand.u32 %v53, 4294901760
    %v1104 = vsub.f32 %v53, %v1103
    %1105 = vmatprep.mubr.f32.mxu0 %v1104
    %v1106 = vand.u32 %v52, 4294901760
    %v1107 = vsub.f32 %v52, %v1106
    %1108 = vmatmul.mubr.f32.gmra.mrb[0].mxu0 %v1107
    %v1109 = vpop.f32.mrb[0].mxu0
    %v1110 = vadd.f32 %v845, %v1109
    %v1111 = vpop.f32.mrb[0].mxu0
    %v1112 = vadd.f32 %v847, %v1111
    %v1113 = vand.u32 %v56, 4294901760
    %v1114 = vsub.f32 %v56, %v1113
    %1115 = vmatprep.mubr.f32.mxu0 %v1114
    %v1116 = vand.u32 %v55, 4294901760
    %v1117 = vsub.f32 %v55, %v1116
    %1118 = vmatmul.mubr.f32.gmra.mrb[0].mxu0 %v1117
    %v1119 = vpop.f32.mrb[0].mxu0
    %v1120 = vadd.f32 %v853, %v1119
    %v1121 = vpop.f32.mrb[0].mxu0
    %v1122 = vadd.f32 %v855, %v1121
    %v1123 = vand.u32 %v59, 4294901760
    %v1124 = vsub.f32 %v59, %v1123
    %1125 = vmatprep.mubr.f32.mxu0 %v1124
    %v1126 = vand.u32 %v58, 4294901760
    %v1127 = vsub.f32 %v58, %v1126
    %1128 = vmatmul.mubr.f32.gmra.mrb[0].mxu0 %v1127
    %v1129 = vpop.f32.mrb[0].mxu0
    %v1130 = vadd.f32 %v861, %v1129
    %v1131 = vpop.f32.mrb[0].mxu0
    %v1132 = vadd.f32 %v863, %v1131
    %v1133 = vand.u32 %v62, 4294901760
    %v1134 = vsub.f32 %v62, %v1133
    %1135 = vmatprep.mubr.f32.mxu0 %v1134
    %v1136 = vand.u32 %v61, 4294901760
    %v1137 = vsub.f32 %v61, %v1136
    %1138 = vmatmul.mubr.f32.gmra.mrb[0].mxu0 %v1137
    %v1139 = vpop.f32.mrb[0].mxu0
    %v1140 = vadd.f32 %v869, %v1139
    %v1141 = vpop.f32.mrb[0].mxu0
    %v1142 = vadd.f32 %v871, %v1141
    %v1143 = vand.u32 %v65, 4294901760
    %v1144 = vsub.f32 %v65, %v1143
    %1145 = vmatprep.mubr.f32.mxu0 %v1144
    %v1146 = vand.u32 %v64, 4294901760
    %v1147 = vsub.f32 %v64, %v1146
    %1148 = vmatmul.mubr.f32.gmra.mrb[0].mxu0 %v1147
    %v1149 = vpop.f32.mrb[0].mxu0
    %v1150 = vadd.f32 %v877, %v1149
    %v1151 = vpop.f32.mrb[0].mxu0
    %v1152 = vadd.f32 %v879, %v1151
    %1153 = vdwg.mxu0
    %v1154 = vand.u32 %v68, 4294901760
    %1155 = vmatprep.subr.mxu0 %v1154
    %v1156 = vand.u32 %v67, 4294901760
    %1157 = vmatpush1.msra.mxu0 %v1156
    %v1158 = vand.u32 %v70, 4294901760
    %1159 = vmatprep.subr.mxu0 %v1158
    %v1160 = vand.u32 %v69, 4294901760
    %1161 = vmatpush1.msra.mxu0 %v1160
    %v1162 = vand.u32 %v72, 4294901760
    %1163 = vmatprep.subr.mxu0 %v1162
    %v1164 = vand.u32 %v71, 4294901760
    %1165 = vmatpush1.msra.mxu0 %v1164
    %v1166 = vand.u32 %v74, 4294901760
    %1167 = vmatprep.subr.mxu0 %v1166
    %v1168 = vand.u32 %v73, 4294901760
    %1169 = vmatpush1.msra.mxu0 %v1168
    %v1170 = vand.u32 %v76, 4294901760
    %1171 = vmatprep.subr.mxu0 %v1170
    %v1172 = vand.u32 %v75, 4294901760
    %1173 = vmatpush1.msra.mxu0 %v1172
    %v1174 = vand.u32 %v78, 4294901760
    %1175 = vmatprep.subr.mxu0 %v1174
    %v1176 = vand.u32 %v77, 4294901760
    %1177 = vmatpush1.msra.mxu0 %v1176
    %v1178 = vand.u32 %v80, 4294901760
    %1179 = vmatprep.subr.mxu0 %v1178
    %v1180 = vand.u32 %v79, 4294901760
    %1181 = vmatpush1.msra.mxu0 %v1180
    %v1182 = vand.u32 %v82, 4294901760
    %1183 = vmatprep.subr.mxu0 %v1182
    %v1184 = vand.u32 %v81, 4294901760
    %1185 = vmatpush1.msra.mxu0 %v1184
    %v1186 = vand.u32 %v84, 4294901760
    %1187 = vmatprep.subr.mxu0 %v1186
    %v1188 = vand.u32 %v83, 4294901760
    %1189 = vmatpush1.msra.mxu0 %v1188
    %v1190 = vand.u32 %v86, 4294901760
    %1191 = vmatprep.subr.mxu0 %v1190
    %v1192 = vand.u32 %v85, 4294901760
    %1193 = vmatpush1.msra.mxu0 %v1192
    %v1194 = vand.u32 %v88, 4294901760
    %1195 = vmatprep.subr.mxu0 %v1194
    %v1196 = vand.u32 %v87, 4294901760
    %1197 = vmatpush1.msra.mxu0 %v1196
    %v1198 = vand.u32 %v90, 4294901760
    %1199 = vmatprep.subr.mxu0 %v1198
    %v1200 = vand.u32 %v89, 4294901760
    %1201 = vmatpush1.msra.mxu0 %v1200
    %v1202 = vand.u32 %v92, 4294901760
    %1203 = vmatprep.subr.mxu0 %v1202
    %v1204 = vand.u32 %v91, 4294901760
    %1205 = vmatpush1.msra.mxu0 %v1204
    %v1206 = vand.u32 %v94, 4294901760
    %1207 = vmatprep.subr.mxu0 %v1206
    %v1208 = vand.u32 %v93, 4294901760
    %1209 = vmatpush1.msra.mxu0 %v1208
    %v1210 = vand.u32 %v96, 4294901760
    %1211 = vmatprep.subr.mxu0 %v1210
    %v1212 = vand.u32 %v95, 4294901760
    %1213 = vmatpush1.msra.mxu0 %v1212
    %v1214 = vand.u32 %v98, 4294901760
    %1215 = vmatprep.subr.mxu0 %v1214
    %v1216 = vand.u32 %v97, 4294901760
    %1217 = vmatpush1.msra.mxu0 %v1216
    %v1218 = vand.u32 %v100, 4294901760
    %1219 = vmatprep.subr.mxu0 %v1218
    %v1220 = vand.u32 %v99, 4294901760
    %1221 = vmatpush1.msra.mxu0 %v1220
    %v1222 = vand.u32 %v102, 4294901760
    %1223 = vmatprep.subr.mxu0 %v1222
    %v1224 = vand.u32 %v101, 4294901760
    %1225 = vmatpush1.msra.mxu0 %v1224
    %v1226 = vand.u32 %v104, 4294901760
    %1227 = vmatprep.subr.mxu0 %v1226
    %v1228 = vand.u32 %v103, 4294901760
    %1229 = vmatpush1.msra.mxu0 %v1228
    %v1230 = vand.u32 %v106, 4294901760
    %1231 = vmatprep.subr.mxu0 %v1230
    %v1232 = vand.u32 %v105, 4294901760
    %1233 = vmatpush1.msra.mxu0 %v1232
    %v1234 = vand.u32 %v108, 4294901760
    %1235 = vmatprep.subr.mxu0 %v1234
    %v1236 = vand.u32 %v107, 4294901760
    %1237 = vmatpush1.msra.mxu0 %v1236
    %v1238 = vand.u32 %v110, 4294901760
    %1239 = vmatprep.subr.mxu0 %v1238
    %v1240 = vand.u32 %v109, 4294901760
    %1241 = vmatpush1.msra.mxu0 %v1240
    %v1242 = vand.u32 %v112, 4294901760
    %1243 = vmatprep.subr.mxu0 %v1242
    %v1244 = vand.u32 %v111, 4294901760
    %1245 = vmatpush1.msra.mxu0 %v1244
    %v1246 = vand.u32 %v114, 4294901760
    %1247 = vmatprep.subr.mxu0 %v1246
    %v1248 = vand.u32 %v113, 4294901760
    %1249 = vmatpush1.msra.mxu0 %v1248
    %v1250 = vand.u32 %v116, 4294901760
    %1251 = vmatprep.subr.mxu0 %v1250
    %v1252 = vand.u32 %v115, 4294901760
    %1253 = vmatpush1.msra.mxu0 %v1252
    %v1254 = vand.u32 %v118, 4294901760
    %1255 = vmatprep.subr.mxu0 %v1254
    %v1256 = vand.u32 %v117, 4294901760
    %1257 = vmatpush1.msra.mxu0 %v1256
    %v1258 = vand.u32 %v120, 4294901760
    %1259 = vmatprep.subr.mxu0 %v1258
    %v1260 = vand.u32 %v119, 4294901760
    %1261 = vmatpush1.msra.mxu0 %v1260
    %v1262 = vand.u32 %v122, 4294901760
    %1263 = vmatprep.subr.mxu0 %v1262
    %v1264 = vand.u32 %v121, 4294901760
    %1265 = vmatpush1.msra.mxu0 %v1264
    %v1266 = vand.u32 %v124, 4294901760
    %1267 = vmatprep.subr.mxu0 %v1266
    %v1268 = vand.u32 %v123, 4294901760
    %1269 = vmatpush1.msra.mxu0 %v1268
    %v1270 = vand.u32 %v126, 4294901760
    %1271 = vmatprep.subr.mxu0 %v1270
    %v1272 = vand.u32 %v125, 4294901760
    %1273 = vmatpush1.msra.mxu0 %v1272
    %v1274 = vand.u32 %v128, 4294901760
    %1275 = vmatprep.subr.mxu0 %v1274
    %v1276 = vand.u32 %v127, 4294901760
    %1277 = vmatpush1.msra.mxu0 %v1276
    %v1278 = vand.u32 %v130, 4294901760
    %1279 = vmatprep.subr.mxu0 %v1278
    %v1280 = vand.u32 %v129, 4294901760
    %1281 = vmatpush1.msra.mxu0 %v1280
    %v1282 = vand.u32 %v44, 4294901760
    %v1283 = vsub.f32 %v44, %v1282
    %v1284 = vand.u32 %v1283, 4294901760
    %1285 = vmatprep.mubr.f32.mxu0 %v1284
    %v1286 = vand.u32 %v43, 4294901760
    %v1287 = vsub.f32 %v43, %v1286
    %v1288 = vand.u32 %v1287, 4294901760
    %1289 = vmatmul.mubr.f32.gmra.mrb[0].mxu0 %v1288
    %v1290 = vpop.f32.mrb[0].mxu0
    %v1291 = vadd.f32 %v1080, %v1290
    %v1292 = vpop.f32.mrb[0].mxu0
    %v1293 = vadd.f32 %v1082, %v1292
    %v1294 = vand.u32 %v47, 4294901760
    %v1295 = vsub.f32 %v47, %v1294
    %v1296 = vand.u32 %v1295, 4294901760
    %1297 = vmatprep.mubr.f32.mxu0 %v1296
    %v1298 = vand.u32 %v46, 4294901760
    %v1299 = vsub.f32 %v46, %v1298
    %v1300 = vand.u32 %v1299, 4294901760
    %1301 = vmatmul.mubr.f32.gmra.mrb[0].mxu0 %v1300
    %v1302 = vpop.f32.mrb[0].mxu0
    %v1303 = vadd.f32 %v1090, %v1302
    %v1304 = vpop.f32.mrb[0].mxu0
    %v1305 = vadd.f32 %v1092, %v1304
    %v1306 = vand.u32 %v50, 4294901760
    %v1307 = vsub.f32 %v50, %v1306
    %v1308 = vand.u32 %v1307, 4294901760
    %1309 = vmatprep.mubr.f32.mxu0 %v1308
    %v1310 = vand.u32 %v49, 4294901760
    %v1311 = vsub.f32 %v49, %v1310
    %v1312 = vand.u32 %v1311, 4294901760
    %1313 = vmatmul.mubr.f32.gmra.mrb[0].mxu0 %v1312
    %v1314 = vpop.f32.mrb[0].mxu0
    %v1315 = vadd.f32 %v1100, %v1314
    %v1316 = vpop.f32.mrb[0].mxu0
    %v1317 = vadd.f32 %v1102, %v1316
    %v1318 = vand.u32 %v53, 4294901760
    %v1319 = vsub.f32 %v53, %v1318
    %v1320 = vand.u32 %v1319, 4294901760
    %1321 = vmatprep.mubr.f32.mxu0 %v1320
    %v1322 = vand.u32 %v52, 4294901760
    %v1323 = vsub.f32 %v52, %v1322
    %v1324 = vand.u32 %v1323, 4294901760
    %1325 = vmatmul.mubr.f32.gmra.mrb[0].mxu0 %v1324
    %v1326 = vpop.f32.mrb[0].mxu0
    %v1327 = vadd.f32 %v1110, %v1326
    %v1328 = vpop.f32.mrb[0].mxu0
    %v1329 = vadd.f32 %v1112, %v1328
    %v1330 = vand.u32 %v56, 4294901760
    %v1331 = vsub.f32 %v56, %v1330
    %v1332 = vand.u32 %v1331, 4294901760
    %1333 = vmatprep.mubr.f32.mxu0 %v1332
    %v1334 = vand.u32 %v55, 4294901760
    %v1335 = vsub.f32 %v55, %v1334
    %v1336 = vand.u32 %v1335, 4294901760
    %1337 = vmatmul.mubr.f32.gmra.mrb[0].mxu0 %v1336
    %v1338 = vpop.f32.mrb[0].mxu0
    %v1339 = vadd.f32 %v1120, %v1338
    %v1340 = vpop.f32.mrb[0].mxu0
    %v1341 = vadd.f32 %v1122, %v1340
    %v1342 = vand.u32 %v59, 4294901760
    %v1343 = vsub.f32 %v59, %v1342
    %v1344 = vand.u32 %v1343, 4294901760
    %1345 = vmatprep.mubr.f32.mxu0 %v1344
    %v1346 = vand.u32 %v58, 4294901760
    %v1347 = vsub.f32 %v58, %v1346
    %v1348 = vand.u32 %v1347, 4294901760
    %1349 = vmatmul.mubr.f32.gmra.mrb[0].mxu0 %v1348
    %v1350 = vpop.f32.mrb[0].mxu0
    %v1351 = vadd.f32 %v1130, %v1350
    %v1352 = vpop.f32.mrb[0].mxu0
    %v1353 = vadd.f32 %v1132, %v1352
    %v1354 = vand.u32 %v62, 4294901760
    %v1355 = vsub.f32 %v62, %v1354
    %v1356 = vand.u32 %v1355, 4294901760
    %1357 = vmatprep.mubr.f32.mxu0 %v1356
    %v1358 = vand.u32 %v61, 4294901760
    %v1359 = vsub.f32 %v61, %v1358
    %v1360 = vand.u32 %v1359, 4294901760
    %1361 = vmatmul.mubr.f32.gmra.mrb[0].mxu0 %v1360
    %v1362 = vpop.f32.mrb[0].mxu0
    %v1363 = vadd.f32 %v1140, %v1362
    %v1364 = vpop.f32.mrb[0].mxu0
    %v1365 = vadd.f32 %v1142, %v1364
    %v1366 = vand.u32 %v65, 4294901760
    %v1367 = vsub.f32 %v65, %v1366
    %v1368 = vand.u32 %v1367, 4294901760
    %1369 = vmatprep.mubr.f32.mxu0 %v1368
    %v1370 = vand.u32 %v64, 4294901760
    %v1371 = vsub.f32 %v64, %v1370
    %v1372 = vand.u32 %v1371, 4294901760
    %1373 = vmatmul.mubr.f32.gmra.mrb[0].mxu0 %v1372
    %v1374 = vpop.f32.mrb[0].mxu0
    %v1375 = vadd.f32 %v1150, %v1374
    %v1376 = vpop.f32.mrb[0].mxu0
    %v1377 = vadd.f32 %v1152, %v1376
    %1378 = vdwg.mxu0
    %v1379 = vand.u32 %v68, 4294901760
    %v1380 = vsub.f32 %v68, %v1379
    %v1381 = vand.u32 %v1380, 4294901760
    %1382 = vmatprep.subr.mxu0 %v1381
    %v1383 = vand.u32 %v67, 4294901760
    %v1384 = vsub.f32 %v67, %v1383
    %v1385 = vand.u32 %v1384, 4294901760
    %1386 = vmatpush1.msra.mxu0 %v1385
    %v1387 = vand.u32 %v70, 4294901760
    %v1388 = vsub.f32 %v70, %v1387
    %v1389 = vand.u32 %v1388, 4294901760
    %1390 = vmatprep.subr.mxu0 %v1389
    %v1391 = vand.u32 %v69, 4294901760
    %v1392 = vsub.f32 %v69, %v1391
    %v1393 = vand.u32 %v1392, 4294901760
    %1394 = vmatpush1.msra.mxu0 %v1393
    %v1395 = vand.u32 %v72, 4294901760
    %v1396 = vsub.f32 %v72, %v1395
    %v1397 = vand.u32 %v1396, 4294901760
    %1398 = vmatprep.subr.mxu0 %v1397
    %v1399 = vand.u32 %v71, 4294901760
    %v1400 = vsub.f32 %v71, %v1399
    %v1401 = vand.u32 %v1400, 4294901760
    %1402 = vmatpush1.msra.mxu0 %v1401
    %v1403 = vand.u32 %v74, 4294901760
    %v1404 = vsub.f32 %v74, %v1403
    %v1405 = vand.u32 %v1404, 4294901760
    %1406 = vmatprep.subr.mxu0 %v1405
    %v1407 = vand.u32 %v73, 4294901760
    %v1408 = vsub.f32 %v73, %v1407
    %v1409 = vand.u32 %v1408, 4294901760
    %1410 = vmatpush1.msra.mxu0 %v1409
    %v1411 = vand.u32 %v76, 4294901760
    %v1412 = vsub.f32 %v76, %v1411
    %v1413 = vand.u32 %v1412, 4294901760
    %1414 = vmatprep.subr.mxu0 %v1413
    %v1415 = vand.u32 %v75, 4294901760
    %v1416 = vsub.f32 %v75, %v1415
    %v1417 = vand.u32 %v1416, 4294901760
    %1418 = vmatpush1.msra.mxu0 %v1417
    %v1419 = vand.u32 %v78, 4294901760
    %v1420 = vsub.f32 %v78, %v1419
    %v1421 = vand.u32 %v1420, 4294901760
    %1422 = vmatprep.subr.mxu0 %v1421
    %v1423 = vand.u32 %v77, 4294901760
    %v1424 = vsub.f32 %v77, %v1423
    %v1425 = vand.u32 %v1424, 4294901760
    %1426 = vmatpush1.msra.mxu0 %v1425
    %v1427 = vand.u32 %v80, 4294901760
    %v1428 = vsub.f32 %v80, %v1427
    %v1429 = vand.u32 %v1428, 4294901760
    %1430 = vmatprep.subr.mxu0 %v1429
    %v1431 = vand.u32 %v79, 4294901760
    %v1432 = vsub.f32 %v79, %v1431
    %v1433 = vand.u32 %v1432, 4294901760
    %1434 = vmatpush1.msra.mxu0 %v1433
    %v1435 = vand.u32 %v82, 4294901760
    %v1436 = vsub.f32 %v82, %v1435
    %v1437 = vand.u32 %v1436, 4294901760
    %1438 = vmatprep.subr.mxu0 %v1437
    %v1439 = vand.u32 %v81, 4294901760
    %v1440 = vsub.f32 %v81, %v1439
    %v1441 = vand.u32 %v1440, 4294901760
    %1442 = vmatpush1.msra.mxu0 %v1441
    %v1443 = vand.u32 %v84, 4294901760
    %v1444 = vsub.f32 %v84, %v1443
    %v1445 = vand.u32 %v1444, 4294901760
    %1446 = vmatprep.subr.mxu0 %v1445
    %v1447 = vand.u32 %v83, 4294901760
    %v1448 = vsub.f32 %v83, %v1447
    %v1449 = vand.u32 %v1448, 4294901760
    %1450 = vmatpush1.msra.mxu0 %v1449
    %v1451 = vand.u32 %v86, 4294901760
    %v1452 = vsub.f32 %v86, %v1451
    %v1453 = vand.u32 %v1452, 4294901760
    %1454 = vmatprep.subr.mxu0 %v1453
    %v1455 = vand.u32 %v85, 4294901760
    %v1456 = vsub.f32 %v85, %v1455
    %v1457 = vand.u32 %v1456, 4294901760
    %1458 = vmatpush1.msra.mxu0 %v1457
    %v1459 = vand.u32 %v88, 4294901760
    %v1460 = vsub.f32 %v88, %v1459
    %v1461 = vand.u32 %v1460, 4294901760
    %1462 = vmatprep.subr.mxu0 %v1461
    %v1463 = vand.u32 %v87, 4294901760
    %v1464 = vsub.f32 %v87, %v1463
    %v1465 = vand.u32 %v1464, 4294901760
    %1466 = vmatpush1.msra.mxu0 %v1465
    %v1467 = vand.u32 %v90, 4294901760
    %v1468 = vsub.f32 %v90, %v1467
    %v1469 = vand.u32 %v1468, 4294901760
    %1470 = vmatprep.subr.mxu0 %v1469
    %v1471 = vand.u32 %v89, 4294901760
    %v1472 = vsub.f32 %v89, %v1471
    %v1473 = vand.u32 %v1472, 4294901760
    %1474 = vmatpush1.msra.mxu0 %v1473
    %v1475 = vand.u32 %v92, 4294901760
    %v1476 = vsub.f32 %v92, %v1475
    %v1477 = vand.u32 %v1476, 4294901760
    %1478 = vmatprep.subr.mxu0 %v1477
    %v1479 = vand.u32 %v91, 4294901760
    %v1480 = vsub.f32 %v91, %v1479
    %v1481 = vand.u32 %v1480, 4294901760
    %1482 = vmatpush1.msra.mxu0 %v1481
    %v1483 = vand.u32 %v94, 4294901760
    %v1484 = vsub.f32 %v94, %v1483
    %v1485 = vand.u32 %v1484, 4294901760
    %1486 = vmatprep.subr.mxu0 %v1485
    %v1487 = vand.u32 %v93, 4294901760
    %v1488 = vsub.f32 %v93, %v1487
    %v1489 = vand.u32 %v1488, 4294901760
    %1490 = vmatpush1.msra.mxu0 %v1489
    %v1491 = vand.u32 %v96, 4294901760
    %v1492 = vsub.f32 %v96, %v1491
    %v1493 = vand.u32 %v1492, 4294901760
    %1494 = vmatprep.subr.mxu0 %v1493
    %v1495 = vand.u32 %v95, 4294901760
    %v1496 = vsub.f32 %v95, %v1495
    %v1497 = vand.u32 %v1496, 4294901760
    %1498 = vmatpush1.msra.mxu0 %v1497
    %v1499 = vand.u32 %v98, 4294901760
    %v1500 = vsub.f32 %v98, %v1499
    %v1501 = vand.u32 %v1500, 4294901760
    %1502 = vmatprep.subr.mxu0 %v1501
    %v1503 = vand.u32 %v97, 4294901760
    %v1504 = vsub.f32 %v97, %v1503
    %v1505 = vand.u32 %v1504, 4294901760
    %1506 = vmatpush1.msra.mxu0 %v1505
    %v1507 = vand.u32 %v100, 4294901760
    %v1508 = vsub.f32 %v100, %v1507
    %v1509 = vand.u32 %v1508, 4294901760
    %1510 = vmatprep.subr.mxu0 %v1509
    %v1511 = vand.u32 %v99, 4294901760
    %v1512 = vsub.f32 %v99, %v1511
    %v1513 = vand.u32 %v1512, 4294901760
    %1514 = vmatpush1.msra.mxu0 %v1513
    %v1515 = vand.u32 %v102, 4294901760
    %v1516 = vsub.f32 %v102, %v1515
    %v1517 = vand.u32 %v1516, 4294901760
    %1518 = vmatprep.subr.mxu0 %v1517
    %v1519 = vand.u32 %v101, 4294901760
    %v1520 = vsub.f32 %v101, %v1519
    %v1521 = vand.u32 %v1520, 4294901760
    %1522 = vmatpush1.msra.mxu0 %v1521
    %v1523 = vand.u32 %v104, 4294901760
    %v1524 = vsub.f32 %v104, %v1523
    %v1525 = vand.u32 %v1524, 4294901760
    %1526 = vmatprep.subr.mxu0 %v1525
    %v1527 = vand.u32 %v103, 4294901760
    %v1528 = vsub.f32 %v103, %v1527
    %v1529 = vand.u32 %v1528, 4294901760
    %1530 = vmatpush1.msra.mxu0 %v1529
    %v1531 = vand.u32 %v106, 4294901760
    %v1532 = vsub.f32 %v106, %v1531
    %v1533 = vand.u32 %v1532, 4294901760
    %1534 = vmatprep.subr.mxu0 %v1533
    %v1535 = vand.u32 %v105, 4294901760
    %v1536 = vsub.f32 %v105, %v1535
    %v1537 = vand.u32 %v1536, 4294901760
    %1538 = vmatpush1.msra.mxu0 %v1537
    %v1539 = vand.u32 %v108, 4294901760
    %v1540 = vsub.f32 %v108, %v1539
    %v1541 = vand.u32 %v1540, 4294901760
    %1542 = vmatprep.subr.mxu0 %v1541
    %v1543 = vand.u32 %v107, 4294901760
    %v1544 = vsub.f32 %v107, %v1543
    %v1545 = vand.u32 %v1544, 4294901760
    %1546 = vmatpush1.msra.mxu0 %v1545
    %v1547 = vand.u32 %v110, 4294901760
    %v1548 = vsub.f32 %v110, %v1547
    %v1549 = vand.u32 %v1548, 4294901760
    %1550 = vmatprep.subr.mxu0 %v1549
    %v1551 = vand.u32 %v109, 4294901760
    %v1552 = vsub.f32 %v109, %v1551
    %v1553 = vand.u32 %v1552, 4294901760
    %1554 = vmatpush1.msra.mxu0 %v1553
    %v1555 = vand.u32 %v112, 4294901760
    %v1556 = vsub.f32 %v112, %v1555
    %v1557 = vand.u32 %v1556, 4294901760
    %1558 = vmatprep.subr.mxu0 %v1557
    %v1559 = vand.u32 %v111, 4294901760
    %v1560 = vsub.f32 %v111, %v1559
    %v1561 = vand.u32 %v1560, 4294901760
    %1562 = vmatpush1.msra.mxu0 %v1561
    %v1563 = vand.u32 %v114, 4294901760
    %v1564 = vsub.f32 %v114, %v1563
    %v1565 = vand.u32 %v1564, 4294901760
    %1566 = vmatprep.subr.mxu0 %v1565
    %v1567 = vand.u32 %v113, 4294901760
    %v1568 = vsub.f32 %v113, %v1567
    %v1569 = vand.u32 %v1568, 4294901760
    %1570 = vmatpush1.msra.mxu0 %v1569
    %v1571 = vand.u32 %v116, 4294901760
    %v1572 = vsub.f32 %v116, %v1571
    %v1573 = vand.u32 %v1572, 4294901760
    %1574 = vmatprep.subr.mxu0 %v1573
    %v1575 = vand.u32 %v115, 4294901760
    %v1576 = vsub.f32 %v115, %v1575
    %v1577 = vand.u32 %v1576, 4294901760
    %1578 = vmatpush1.msra.mxu0 %v1577
    %v1579 = vand.u32 %v118, 4294901760
    %v1580 = vsub.f32 %v118, %v1579
    %v1581 = vand.u32 %v1580, 4294901760
    %1582 = vmatprep.subr.mxu0 %v1581
    %v1583 = vand.u32 %v117, 4294901760
    %v1584 = vsub.f32 %v117, %v1583
    %v1585 = vand.u32 %v1584, 4294901760
    %1586 = vmatpush1.msra.mxu0 %v1585
    %v1587 = vand.u32 %v120, 4294901760
    %v1588 = vsub.f32 %v120, %v1587
    %v1589 = vand.u32 %v1588, 4294901760
    %1590 = vmatprep.subr.mxu0 %v1589
    %v1591 = vand.u32 %v119, 4294901760
    %v1592 = vsub.f32 %v119, %v1591
    %v1593 = vand.u32 %v1592, 4294901760
    %1594 = vmatpush1.msra.mxu0 %v1593
    %v1595 = vand.u32 %v122, 4294901760
    %v1596 = vsub.f32 %v122, %v1595
    %v1597 = vand.u32 %v1596, 4294901760
    %1598 = vmatprep.subr.mxu0 %v1597
    %v1599 = vand.u32 %v121, 4294901760
    %v1600 = vsub.f32 %v121, %v1599
    %v1601 = vand.u32 %v1600, 4294901760
    %1602 = vmatpush1.msra.mxu0 %v1601
    %v1603 = vand.u32 %v124, 4294901760
    %v1604 = vsub.f32 %v124, %v1603
    %v1605 = vand.u32 %v1604, 4294901760
    %1606 = vmatprep.subr.mxu0 %v1605
    %v1607 = vand.u32 %v123, 4294901760
    %v1608 = vsub.f32 %v123, %v1607
    %v1609 = vand.u32 %v1608, 4294901760
    %1610 = vmatpush1.msra.mxu0 %v1609
    %v1611 = vand.u32 %v126, 4294901760
    %v1612 = vsub.f32 %v126, %v1611
    %v1613 = vand.u32 %v1612, 4294901760
    %1614 = vmatprep.subr.mxu0 %v1613
    %v1615 = vand.u32 %v125, 4294901760
    %v1616 = vsub.f32 %v125, %v1615
    %v1617 = vand.u32 %v1616, 4294901760
    %1618 = vmatpush1.msra.mxu0 %v1617
    %v1619 = vand.u32 %v128, 4294901760
    %v1620 = vsub.f32 %v128, %v1619
    %v1621 = vand.u32 %v1620, 4294901760
    %1622 = vmatprep.subr.mxu0 %v1621
    %v1623 = vand.u32 %v127, 4294901760
    %v1624 = vsub.f32 %v127, %v1623
    %v1625 = vand.u32 %v1624, 4294901760
    %1626 = vmatpush1.msra.mxu0 %v1625
    %v1627 = vand.u32 %v130, 4294901760
    %v1628 = vsub.f32 %v130, %v1627
    %v1629 = vand.u32 %v1628, 4294901760
    %1630 = vmatprep.subr.mxu0 %v1629
    %v1631 = vand.u32 %v129, 4294901760
    %v1632 = vsub.f32 %v129, %v1631
    %v1633 = vand.u32 %v1632, 4294901760
    %1634 = vmatpush1.msra.mxu0 %v1633
    %v1635 = vand.u32 %v44, 4294901760
    %1636 = vmatprep.mubr.f32.mxu0 %v1635
    %v1637 = vand.u32 %v43, 4294901760
    %1638 = vmatmul.mubr.f32.gmra.mrb[0].mxu0 %v1637
    %v1639 = vpop.f32.mrb[0].mxu0
    %v1640 = vadd.f32 %v1291, %v1639
    %v1641 = vpop.f32.mrb[0].mxu0
    %v1642 = vadd.f32 %v1293, %v1641
    %v1643 = vand.u32 %v47, 4294901760
    %1644 = vmatprep.mubr.f32.mxu0 %v1643
    %v1645 = vand.u32 %v46, 4294901760
    %1646 = vmatmul.mubr.f32.gmra.mrb[0].mxu0 %v1645
    %v1647 = vpop.f32.mrb[0].mxu0
    %v1648 = vadd.f32 %v1303, %v1647
    %v1649 = vpop.f32.mrb[0].mxu0
    %v1650 = vadd.f32 %v1305, %v1649
    %v1651 = vand.u32 %v50, 4294901760
    %1652 = vmatprep.mubr.f32.mxu0 %v1651
    %v1653 = vand.u32 %v49, 4294901760
    %1654 = vmatmul.mubr.f32.gmra.mrb[0].mxu0 %v1653
    %v1655 = vpop.f32.mrb[0].mxu0
    %v1656 = vadd.f32 %v1315, %v1655
    %v1657 = vpop.f32.mrb[0].mxu0
    %v1658 = vadd.f32 %v1317, %v1657
    %v1659 = vand.u32 %v53, 4294901760
    %1660 = vmatprep.mubr.f32.mxu0 %v1659
    %v1661 = vand.u32 %v52, 4294901760
    %1662 = vmatmul.mubr.f32.gmra.mrb[0].mxu0 %v1661
    %v1663 = vpop.f32.mrb[0].mxu0
    %v1664 = vadd.f32 %v1327, %v1663
    %v1665 = vpop.f32.mrb[0].mxu0
    %v1666 = vadd.f32 %v1329, %v1665
    %v1667 = vand.u32 %v56, 4294901760
    %1668 = vmatprep.mubr.f32.mxu0 %v1667
    %v1669 = vand.u32 %v55, 4294901760
    %1670 = vmatmul.mubr.f32.gmra.mrb[0].mxu0 %v1669
    %v1671 = vpop.f32.mrb[0].mxu0
    %v1672 = vadd.f32 %v1339, %v1671
    %v1673 = vpop.f32.mrb[0].mxu0
    %v1674 = vadd.f32 %v1341, %v1673
    %v1675 = vand.u32 %v59, 4294901760
    %1676 = vmatprep.mubr.f32.mxu0 %v1675
    %v1677 = vand.u32 %v58, 4294901760
    %1678 = vmatmul.mubr.f32.gmra.mrb[0].mxu0 %v1677
    %v1679 = vpop.f32.mrb[0].mxu0
    %v1680 = vadd.f32 %v1351, %v1679
    %v1681 = vpop.f32.mrb[0].mxu0
    %v1682 = vadd.f32 %v1353, %v1681
    %v1683 = vand.u32 %v62, 4294901760
    %1684 = vmatprep.mubr.f32.mxu0 %v1683
    %v1685 = vand.u32 %v61, 4294901760
    %1686 = vmatmul.mubr.f32.gmra.mrb[0].mxu0 %v1685
    %v1687 = vpop.f32.mrb[0].mxu0
    %v1688 = vadd.f32 %v1363, %v1687
    %v1689 = vpop.f32.mrb[0].mxu0
    %v1690 = vadd.f32 %v1365, %v1689
    %v1691 = vand.u32 %v65, 4294901760
    %1692 = vmatprep.mubr.f32.mxu0 %v1691
    %v1693 = vand.u32 %v64, 4294901760
    %1694 = vmatmul.mubr.f32.gmra.mrb[0].mxu0 %v1693
    %v1695 = vpop.f32.mrb[0].mxu0
    %v1696 = vadd.f32 %v1375, %v1695
    %v1697 = vpop.f32.mrb[0].mxu0
    %v1698 = vadd.f32 %v1377, %v1697
    %1699 = vdwg.mxu0
    %v1700 = vand.u32 %v68, 4294901760
    %1701 = vmatprep.subr.mxu0 %v1700
    %v1702 = vand.u32 %v67, 4294901760
    %1703 = vmatpush1.msra.mxu0 %v1702
    %v1704 = vand.u32 %v70, 4294901760
    %1705 = vmatprep.subr.mxu0 %v1704
    %v1706 = vand.u32 %v69, 4294901760
    %1707 = vmatpush1.msra.mxu0 %v1706
    %v1708 = vand.u32 %v72, 4294901760
    %1709 = vmatprep.subr.mxu0 %v1708
    %v1710 = vand.u32 %v71, 4294901760
    %1711 = vmatpush1.msra.mxu0 %v1710
    %v1712 = vand.u32 %v74, 4294901760
    %1713 = vmatprep.subr.mxu0 %v1712
    %v1714 = vand.u32 %v73, 4294901760
    %1715 = vmatpush1.msra.mxu0 %v1714
    %v1716 = vand.u32 %v76, 4294901760
    %1717 = vmatprep.subr.mxu0 %v1716
    %v1718 = vand.u32 %v75, 4294901760
    %1719 = vmatpush1.msra.mxu0 %v1718
    %v1720 = vand.u32 %v78, 4294901760
    %1721 = vmatprep.subr.mxu0 %v1720
    %v1722 = vand.u32 %v77, 4294901760
    %1723 = vmatpush1.msra.mxu0 %v1722
    %v1724 = vand.u32 %v80, 4294901760
    %1725 = vmatprep.subr.mxu0 %v1724
    %v1726 = vand.u32 %v79, 4294901760
    %1727 = vmatpush1.msra.mxu0 %v1726
    %v1728 = vand.u32 %v82, 4294901760
    %1729 = vmatprep.subr.mxu0 %v1728
    %v1730 = vand.u32 %v81, 4294901760
    %1731 = vmatpush1.msra.mxu0 %v1730
    %v1732 = vand.u32 %v84, 4294901760
    %1733 = vmatprep.subr.mxu0 %v1732
    %v1734 = vand.u32 %v83, 4294901760
    %1735 = vmatpush1.msra.mxu0 %v1734
    %v1736 = vand.u32 %v86, 4294901760
    %1737 = vmatprep.subr.mxu0 %v1736
    %v1738 = vand.u32 %v85, 4294901760
    %1739 = vmatpush1.msra.mxu0 %v1738
    %v1740 = vand.u32 %v88, 4294901760
    %1741 = vmatprep.subr.mxu0 %v1740
    %v1742 = vand.u32 %v87, 4294901760
    %1743 = vmatpush1.msra.mxu0 %v1742
    %v1744 = vand.u32 %v90, 4294901760
    %1745 = vmatprep.subr.mxu0 %v1744
    %v1746 = vand.u32 %v89, 4294901760
    %1747 = vmatpush1.msra.mxu0 %v1746
    %v1748 = vand.u32 %v92, 4294901760
    %1749 = vmatprep.subr.mxu0 %v1748
    %v1750 = vand.u32 %v91, 4294901760
    %1751 = vmatpush1.msra.mxu0 %v1750
    %v1752 = vand.u32 %v94, 4294901760
    %1753 = vmatprep.subr.mxu0 %v1752
    %v1754 = vand.u32 %v93, 4294901760
    %1755 = vmatpush1.msra.mxu0 %v1754
    %v1756 = vand.u32 %v96, 4294901760
    %1757 = vmatprep.subr.mxu0 %v1756
    %v1758 = vand.u32 %v95, 4294901760
    %1759 = vmatpush1.msra.mxu0 %v1758
    %v1760 = vand.u32 %v98, 4294901760
    %1761 = vmatprep.subr.mxu0 %v1760
    %v1762 = vand.u32 %v97, 4294901760
    %1763 = vmatpush1.msra.mxu0 %v1762
    %v1764 = vand.u32 %v100, 4294901760
    %1765 = vmatprep.subr.mxu0 %v1764
    %v1766 = vand.u32 %v99, 4294901760
    %1767 = vmatpush1.msra.mxu0 %v1766
    %v1768 = vand.u32 %v102, 4294901760
    %1769 = vmatprep.subr.mxu0 %v1768
    %v1770 = vand.u32 %v101, 4294901760
    %1771 = vmatpush1.msra.mxu0 %v1770
    %v1772 = vand.u32 %v104, 4294901760
    %1773 = vmatprep.subr.mxu0 %v1772
    %v1774 = vand.u32 %v103, 4294901760
    %1775 = vmatpush1.msra.mxu0 %v1774
    %v1776 = vand.u32 %v106, 4294901760
    %1777 = vmatprep.subr.mxu0 %v1776
    %v1778 = vand.u32 %v105, 4294901760
    %1779 = vmatpush1.msra.mxu0 %v1778
    %v1780 = vand.u32 %v108, 4294901760
    %1781 = vmatprep.subr.mxu0 %v1780
    %v1782 = vand.u32 %v107, 4294901760
    %1783 = vmatpush1.msra.mxu0 %v1782
    %v1784 = vand.u32 %v110, 4294901760
    %1785 = vmatprep.subr.mxu0 %v1784
    %v1786 = vand.u32 %v109, 4294901760
    %1787 = vmatpush1.msra.mxu0 %v1786
    %v1788 = vand.u32 %v112, 4294901760
    %1789 = vmatprep.subr.mxu0 %v1788
    %v1790 = vand.u32 %v111, 4294901760
    %1791 = vmatpush1.msra.mxu0 %v1790
    %v1792 = vand.u32 %v114, 4294901760
    %1793 = vmatprep.subr.mxu0 %v1792
    %v1794 = vand.u32 %v113, 4294901760
    %1795 = vmatpush1.msra.mxu0 %v1794
    %v1796 = vand.u32 %v116, 4294901760
    %1797 = vmatprep.subr.mxu0 %v1796
    %v1798 = vand.u32 %v115, 4294901760
    %1799 = vmatpush1.msra.mxu0 %v1798
    %v1800 = vand.u32 %v118, 4294901760
    %1801 = vmatprep.subr.mxu0 %v1800
    %v1802 = vand.u32 %v117, 4294901760
    %1803 = vmatpush1.msra.mxu0 %v1802
    %v1804 = vand.u32 %v120, 4294901760
    %1805 = vmatprep.subr.mxu0 %v1804
    %v1806 = vand.u32 %v119, 4294901760
    %1807 = vmatpush1.msra.mxu0 %v1806
    %v1808 = vand.u32 %v122, 4294901760
    %1809 = vmatprep.subr.mxu0 %v1808
    %v1810 = vand.u32 %v121, 4294901760
    %1811 = vmatpush1.msra.mxu0 %v1810
    %v1812 = vand.u32 %v124, 4294901760
    %1813 = vmatprep.subr.mxu0 %v1812
    %v1814 = vand.u32 %v123, 4294901760
    %1815 = vmatpush1.msra.mxu0 %v1814
    %v1816 = vand.u32 %v126, 4294901760
    %1817 = vmatprep.subr.mxu0 %v1816
    %v1818 = vand.u32 %v125, 4294901760
    %1819 = vmatpush1.msra.mxu0 %v1818
    %v1820 = vand.u32 %v128, 4294901760
    %1821 = vmatprep.subr.mxu0 %v1820
    %v1822 = vand.u32 %v127, 4294901760
    %1823 = vmatpush1.msra.mxu0 %v1822
    %v1824 = vand.u32 %v130, 4294901760
    %1825 = vmatprep.subr.mxu0 %v1824
    %v1826 = vand.u32 %v129, 4294901760
    %1827 = vmatpush1.msra.mxu0 %v1826
    %v1828 = vand.u32 %v44, 4294901760
    %1829 = vmatprep.mubr.f32.mxu0 %v1828
    %v1830 = vand.u32 %v43, 4294901760
    %1831 = vmatmul.mubr.f32.gmra.mrb[0].mxu0 %v1830
    %v1832 = vpop.f32.mrb[0].mxu0
    %v1833 = vadd.f32 %v1640, %v1832
    %v1834 = vpop.f32.mrb[0].mxu0
    %v1835 = vadd.f32 %v1642, %v1834
    %v1836 = vand.u32 %v47, 4294901760
    %1837 = vmatprep.mubr.f32.mxu0 %v1836
    %v1838 = vand.u32 %v46, 4294901760
    %1839 = vmatmul.mubr.f32.gmra.mrb[0].mxu0 %v1838
    %v1840 = vpop.f32.mrb[0].mxu0
    %v1841 = vadd.f32 %v1648, %v1840
    %v1842 = vpop.f32.mrb[0].mxu0
    %v1843 = vadd.f32 %v1650, %v1842
    %v1844 = vand.u32 %v50, 4294901760
    %1845 = vmatprep.mubr.f32.mxu0 %v1844
    %v1846 = vand.u32 %v49, 4294901760
    %1847 = vmatmul.mubr.f32.gmra.mrb[0].mxu0 %v1846
    %v1848 = vpop.f32.mrb[0].mxu0
    %v1849 = vadd.f32 %v1656, %v1848
    %v1850 = vpop.f32.mrb[0].mxu0
    %v1851 = vadd.f32 %v1658, %v1850
    %v1852 = vand.u32 %v53, 4294901760
    %1853 = vmatprep.mubr.f32.mxu0 %v1852
    %v1854 = vand.u32 %v52, 4294901760
    %1855 = vmatmul.mubr.f32.gmra.mrb[0].mxu0 %v1854
    %v1856 = vpop.f32.mrb[0].mxu0
    %v1857 = vadd.f32 %v1664, %v1856
    %v1858 = vpop.f32.mrb[0].mxu0
    %v1859 = vadd.f32 %v1666, %v1858
    %v1860 = vand.u32 %v56, 4294901760
    %1861 = vmatprep.mubr.f32.mxu0 %v1860
    %v1862 = vand.u32 %v55, 4294901760
    %1863 = vmatmul.mubr.f32.gmra.mrb[0].mxu0 %v1862
    %v1864 = vpop.f32.mrb[0].mxu0
    %v1865 = vadd.f32 %v1672, %v1864
    %v1866 = vpop.f32.mrb[0].mxu0
    %v1867 = vadd.f32 %v1674, %v1866
    %v1868 = vand.u32 %v59, 4294901760
    %1869 = vmatprep.mubr.f32.mxu0 %v1868
    %v1870 = vand.u32 %v58, 4294901760
    %1871 = vmatmul.mubr.f32.gmra.mrb[0].mxu0 %v1870
    %v1872 = vpop.f32.mrb[0].mxu0
    %v1873 = vadd.f32 %v1680, %v1872
    %v1874 = vpop.f32.mrb[0].mxu0
    %v1875 = vadd.f32 %v1682, %v1874
    %v1876 = vand.u32 %v62, 4294901760
    %1877 = vmatprep.mubr.f32.mxu0 %v1876
    %v1878 = vand.u32 %v61, 4294901760
    %1879 = vmatmul.mubr.f32.gmra.mrb[0].mxu0 %v1878
    %v1880 = vpop.f32.mrb[0].mxu0
    %v1881 = vadd.f32 %v1688, %v1880
    %v1882 = vpop.f32.mrb[0].mxu0
    %v1883 = vadd.f32 %v1690, %v1882
    %v1884 = vand.u32 %v65, 4294901760
    %1885 = vmatprep.mubr.f32.mxu0 %v1884
    %v1886 = vand.u32 %v64, 4294901760
    %1887 = vmatmul.mubr.f32.gmra.mrb[0].mxu0 %v1886
    %v1888 = vpop.f32.mrb[0].mxu0
    %v1889 = vadd.f32 %v1696, %v1888
    %v1890 = vpop.f32.mrb[0].mxu0
    %v1891 = vadd.f32 %v1698, %v1890
    %1892 = vdwg.mxu0
    %v1893 = vand.u32 %v132, 4294901760
    %1894 = vmatprep.subr.mxu0 %v1893
    %v1895 = vand.u32 %v131, 4294901760
    %1896 = vmatpush1.msra.mxu0 %v1895
    %v1897 = vand.u32 %v134, 4294901760
    %1898 = vmatprep.subr.mxu0 %v1897
    %v1899 = vand.u32 %v133, 4294901760
    %1900 = vmatpush1.msra.mxu0 %v1899
    %v1901 = vand.u32 %v136, 4294901760
    %1902 = vmatprep.subr.mxu0 %v1901
    %v1903 = vand.u32 %v135, 4294901760
    %1904 = vmatpush1.msra.mxu0 %v1903
    %v1905 = vand.u32 %v138, 4294901760
    %1906 = vmatprep.subr.mxu0 %v1905
    %v1907 = vand.u32 %v137, 4294901760
    %1908 = vmatpush1.msra.mxu0 %v1907
    %v1909 = vand.u32 %v140, 4294901760
    %1910 = vmatprep.subr.mxu0 %v1909
    %v1911 = vand.u32 %v139, 4294901760
    %1912 = vmatpush1.msra.mxu0 %v1911
    %v1913 = vand.u32 %v142, 4294901760
    %1914 = vmatprep.subr.mxu0 %v1913
    %v1915 = vand.u32 %v141, 4294901760
    %1916 = vmatpush1.msra.mxu0 %v1915
    %v1917 = vand.u32 %v144, 4294901760
    %1918 = vmatprep.subr.mxu0 %v1917
    %v1919 = vand.u32 %v143, 4294901760
    %1920 = vmatpush1.msra.mxu0 %v1919
    %v1921 = vand.u32 %v146, 4294901760
    %1922 = vmatprep.subr.mxu0 %v1921
    %v1923 = vand.u32 %v145, 4294901760
    %1924 = vmatpush1.msra.mxu0 %v1923
    %v1925 = vand.u32 %v148, 4294901760
    %1926 = vmatprep.subr.mxu0 %v1925
    %v1927 = vand.u32 %v147, 4294901760
    %1928 = vmatpush1.msra.mxu0 %v1927
    %v1929 = vand.u32 %v150, 4294901760
    %1930 = vmatprep.subr.mxu0 %v1929
    %v1931 = vand.u32 %v149, 4294901760
    %1932 = vmatpush1.msra.mxu0 %v1931
    %v1933 = vand.u32 %v152, 4294901760
    %1934 = vmatprep.subr.mxu0 %v1933
    %v1935 = vand.u32 %v151, 4294901760
    %1936 = vmatpush1.msra.mxu0 %v1935
    %v1937 = vand.u32 %v154, 4294901760
    %1938 = vmatprep.subr.mxu0 %v1937
    %v1939 = vand.u32 %v153, 4294901760
    %1940 = vmatpush1.msra.mxu0 %v1939
    %v1941 = vand.u32 %v156, 4294901760
    %1942 = vmatprep.subr.mxu0 %v1941
    %v1943 = vand.u32 %v155, 4294901760
    %1944 = vmatpush1.msra.mxu0 %v1943
    %v1945 = vand.u32 %v158, 4294901760
    %1946 = vmatprep.subr.mxu0 %v1945
    %v1947 = vand.u32 %v157, 4294901760
    %1948 = vmatpush1.msra.mxu0 %v1947
    %v1949 = vand.u32 %v160, 4294901760
    %1950 = vmatprep.subr.mxu0 %v1949
    %v1951 = vand.u32 %v159, 4294901760
    %1952 = vmatpush1.msra.mxu0 %v1951
    %v1953 = vand.u32 %v162, 4294901760
    %1954 = vmatprep.subr.mxu0 %v1953
    %v1955 = vand.u32 %v161, 4294901760
    %1956 = vmatpush1.msra.mxu0 %v1955
    %1957 = vmatprep.subr.mxu0 0.0
    %1958 = vmatpush1.msra.mxu0 0.0
    %1959 = vmatprep.subr.mxu0 0.0
    %1960 = vmatpush1.msra.mxu0 0.0
    %1961 = vmatprep.subr.mxu0 0.0
    %1962 = vmatpush1.msra.mxu0 0.0
    %1963 = vmatprep.subr.mxu0 0.0
    %1964 = vmatpush1.msra.mxu0 0.0
    %1965 = vmatprep.subr.mxu0 0.0
    %1966 = vmatpush1.msra.mxu0 0.0
    %1967 = vmatprep.subr.mxu0 0.0
    %1968 = vmatpush1.msra.mxu0 0.0
    %1969 = vmatprep.subr.mxu0 0.0
    %1970 = vmatpush1.msra.mxu0 0.0
    %1971 = vmatprep.subr.mxu0 0.0
    %1972 = vmatpush1.msra.mxu0 0.0
    %1973 = vmatprep.subr.mxu0 0.0
    %1974 = vmatpush1.msra.mxu0 0.0
    %1975 = vmatprep.subr.mxu0 0.0
    %1976 = vmatpush1.msra.mxu0 0.0
    %1977 = vmatprep.subr.mxu0 0.0
    %1978 = vmatpush1.msra.mxu0 0.0
    %1979 = vmatprep.subr.mxu0 0.0
    %1980 = vmatpush1.msra.mxu0 0.0
    %1981 = vmatprep.subr.mxu0 0.0
    %1982 = vmatpush1.msra.mxu0 0.0
    %1983 = vmatprep.subr.mxu0 0.0
    %1984 = vmatpush1.msra.mxu0 0.0
    %1985 = vmatprep.subr.mxu0 0.0
    %1986 = vmatpush1.msra.mxu0 0.0
    %1987 = vmatprep.subr.mxu0 0.0
    %1988 = vmatpush1.msra.mxu0 0.0
    %1989 = vmatprep.mubr.f32.mxu0 0.0
    %v1990 = vand.u32 %v45, 4294901760
    %v1991 = vsub.f32 %v45, %v1990
    %v1992 = vand.u32 %v1991, 4294901760
    %v1993 = vsub.f32 %v1991, %v1992
    %v1994 = vand.u32 %v1993, 4294901760
    %1995 = vmatmul.mubr.f32.gmra.mrb[0].mxu0 %v1994
    %v1996 = vpop.f32.mrb[0].mxu0
    %v1997 = vadd.f32 %v1833, %v1996
    %v1998 = vpop.f32.mrb[0].mxu0
    %v1999 = vadd.f32 %v1835, %v1998
    %2000 = vmatprep.mubr.f32.mxu0 0.0
    %v2001 = vand.u32 %v48, 4294901760
    %v2002 = vsub.f32 %v48, %v2001
    %v2003 = vand.u32 %v2002, 4294901760
    %v2004 = vsub.f32 %v2002, %v2003
    %v2005 = vand.u32 %v2004, 4294901760
    %2006 = vmatmul.mubr.f32.gmra.mrb[0].mxu0 %v2005
    %v2007 = vpop.f32.mrb[0].mxu0
    %v2008 = vadd.f32 %v1841, %v2007
    %v2009 = vpop.f32.mrb[0].mxu0
    %v2010 = vadd.f32 %v1843, %v2009
    %2011 = vmatprep.mubr.f32.mxu0 0.0
    %v2012 = vand.u32 %v51, 4294901760
    %v2013 = vsub.f32 %v51, %v2012
    %v2014 = vand.u32 %v2013, 4294901760
    %v2015 = vsub.f32 %v2013, %v2014
    %v2016 = vand.u32 %v2015, 4294901760
    %2017 = vmatmul.mubr.f32.gmra.mrb[0].mxu0 %v2016
    %v2018 = vpop.f32.mrb[0].mxu0
    %v2019 = vadd.f32 %v1849, %v2018
    %v2020 = vpop.f32.mrb[0].mxu0
    %v2021 = vadd.f32 %v1851, %v2020
    %2022 = vmatprep.mubr.f32.mxu0 0.0
    %v2023 = vand.u32 %v54, 4294901760
    %v2024 = vsub.f32 %v54, %v2023
    %v2025 = vand.u32 %v2024, 4294901760
    %v2026 = vsub.f32 %v2024, %v2025
    %v2027 = vand.u32 %v2026, 4294901760
    %2028 = vmatmul.mubr.f32.gmra.mrb[0].mxu0 %v2027
    %v2029 = vpop.f32.mrb[0].mxu0
    %v2030 = vadd.f32 %v1857, %v2029
    %v2031 = vpop.f32.mrb[0].mxu0
    %v2032 = vadd.f32 %v1859, %v2031
    %2033 = vmatprep.mubr.f32.mxu0 0.0
    %v2034 = vand.u32 %v57, 4294901760
    %v2035 = vsub.f32 %v57, %v2034
    %v2036 = vand.u32 %v2035, 4294901760
    %v2037 = vsub.f32 %v2035, %v2036
    %v2038 = vand.u32 %v2037, 4294901760
    %2039 = vmatmul.mubr.f32.gmra.mrb[0].mxu0 %v2038
    %v2040 = vpop.f32.mrb[0].mxu0
    %v2041 = vadd.f32 %v1865, %v2040
    %v2042 = vpop.f32.mrb[0].mxu0
    %v2043 = vadd.f32 %v1867, %v2042
    %2044 = vmatprep.mubr.f32.mxu0 0.0
    %v2045 = vand.u32 %v60, 4294901760
    %v2046 = vsub.f32 %v60, %v2045
    %v2047 = vand.u32 %v2046, 4294901760
    %v2048 = vsub.f32 %v2046, %v2047
    %v2049 = vand.u32 %v2048, 4294901760
    %2050 = vmatmul.mubr.f32.gmra.mrb[0].mxu0 %v2049
    %v2051 = vpop.f32.mrb[0].mxu0
    %v2052 = vadd.f32 %v1873, %v2051
    %v2053 = vpop.f32.mrb[0].mxu0
    %v2054 = vadd.f32 %v1875, %v2053
    %2055 = vmatprep.mubr.f32.mxu0 0.0
    %v2056 = vand.u32 %v63, 4294901760
    %v2057 = vsub.f32 %v63, %v2056
    %v2058 = vand.u32 %v2057, 4294901760
    %v2059 = vsub.f32 %v2057, %v2058
    %v2060 = vand.u32 %v2059, 4294901760
    %2061 = vmatmul.mubr.f32.gmra.mrb[0].mxu0 %v2060
    %v2062 = vpop.f32.mrb[0].mxu0
    %v2063 = vadd.f32 %v1881, %v2062
    %v2064 = vpop.f32.mrb[0].mxu0
    %v2065 = vadd.f32 %v1883, %v2064
    %2066 = vmatprep.mubr.f32.mxu0 0.0
    %v2067 = vand.u32 %v66, 4294901760
    %v2068 = vsub.f32 %v66, %v2067
    %v2069 = vand.u32 %v2068, 4294901760
    %v2070 = vsub.f32 %v2068, %v2069
    %v2071 = vand.u32 %v2070, 4294901760
    %2072 = vmatmul.mubr.f32.gmra.mrb[0].mxu0 %v2071
    %v2073 = vpop.f32.mrb[0].mxu0
    %v2074 = vadd.f32 %v1889, %v2073
    %v2075 = vpop.f32.mrb[0].mxu0
    %v2076 = vadd.f32 %v1891, %v2075
    %2077 = vdwg.mxu0
    %v2078 = vand.u32 %v132, 4294901760
    %v2079 = vsub.f32 %v132, %v2078
    %v2080 = vand.u32 %v2079, 4294901760
    %v2081 = vsub.f32 %v2079, %v2080
    %v2082 = vand.u32 %v2081, 4294901760
    %2083 = vmatprep.subr.mxu0 %v2082
    %v2084 = vand.u32 %v131, 4294901760
    %v2085 = vsub.f32 %v131, %v2084
    %v2086 = vand.u32 %v2085, 4294901760
    %v2087 = vsub.f32 %v2085, %v2086
    %v2088 = vand.u32 %v2087, 4294901760
    %2089 = vmatpush1.msra.mxu0 %v2088
    %v2090 = vand.u32 %v134, 4294901760
    %v2091 = vsub.f32 %v134, %v2090
    %v2092 = vand.u32 %v2091, 4294901760
    %v2093 = vsub.f32 %v2091, %v2092
    %v2094 = vand.u32 %v2093, 4294901760
    %2095 = vmatprep.subr.mxu0 %v2094
    %v2096 = vand.u32 %v133, 4294901760
    %v2097 = vsub.f32 %v133, %v2096
    %v2098 = vand.u32 %v2097, 4294901760
    %v2099 = vsub.f32 %v2097, %v2098
    %v2100 = vand.u32 %v2099, 4294901760
    %2101 = vmatpush1.msra.mxu0 %v2100
    %v2102 = vand.u32 %v136, 4294901760
    %v2103 = vsub.f32 %v136, %v2102
    %v2104 = vand.u32 %v2103, 4294901760
    %v2105 = vsub.f32 %v2103, %v2104
    %v2106 = vand.u32 %v2105, 4294901760
    %2107 = vmatprep.subr.mxu0 %v2106
    %v2108 = vand.u32 %v135, 4294901760
    %v2109 = vsub.f32 %v135, %v2108
    %v2110 = vand.u32 %v2109, 4294901760
    %v2111 = vsub.f32 %v2109, %v2110
    %v2112 = vand.u32 %v2111, 4294901760
    %2113 = vmatpush1.msra.mxu0 %v2112
    %v2114 = vand.u32 %v138, 4294901760
    %v2115 = vsub.f32 %v138, %v2114
    %v2116 = vand.u32 %v2115, 4294901760
    %v2117 = vsub.f32 %v2115, %v2116
    %v2118 = vand.u32 %v2117, 4294901760
    %2119 = vmatprep.subr.mxu0 %v2118
    %v2120 = vand.u32 %v137, 4294901760
    %v2121 = vsub.f32 %v137, %v2120
    %v2122 = vand.u32 %v2121, 4294901760
    %v2123 = vsub.f32 %v2121, %v2122
    %v2124 = vand.u32 %v2123, 4294901760
    %2125 = vmatpush1.msra.mxu0 %v2124
    %v2126 = vand.u32 %v140, 4294901760
    %v2127 = vsub.f32 %v140, %v2126
    %v2128 = vand.u32 %v2127, 4294901760
    %v2129 = vsub.f32 %v2127, %v2128
    %v2130 = vand.u32 %v2129, 4294901760
    %2131 = vmatprep.subr.mxu0 %v2130
    %v2132 = vand.u32 %v139, 4294901760
    %v2133 = vsub.f32 %v139, %v2132
    %v2134 = vand.u32 %v2133, 4294901760
    %v2135 = vsub.f32 %v2133, %v2134
    %v2136 = vand.u32 %v2135, 4294901760
    %2137 = vmatpush1.msra.mxu0 %v2136
    %v2138 = vand.u32 %v142, 4294901760
    %v2139 = vsub.f32 %v142, %v2138
    %v2140 = vand.u32 %v2139, 4294901760
    %v2141 = vsub.f32 %v2139, %v2140
    %v2142 = vand.u32 %v2141, 4294901760
    %2143 = vmatprep.subr.mxu0 %v2142
    %v2144 = vand.u32 %v141, 4294901760
    %v2145 = vsub.f32 %v141, %v2144
    %v2146 = vand.u32 %v2145, 4294901760
    %v2147 = vsub.f32 %v2145, %v2146
    %v2148 = vand.u32 %v2147, 4294901760
    %2149 = vmatpush1.msra.mxu0 %v2148
    %v2150 = vand.u32 %v144, 4294901760
    %v2151 = vsub.f32 %v144, %v2150
    %v2152 = vand.u32 %v2151, 4294901760
    %v2153 = vsub.f32 %v2151, %v2152
    %v2154 = vand.u32 %v2153, 4294901760
    %2155 = vmatprep.subr.mxu0 %v2154
    %v2156 = vand.u32 %v143, 4294901760
    %v2157 = vsub.f32 %v143, %v2156
    %v2158 = vand.u32 %v2157, 4294901760
    %v2159 = vsub.f32 %v2157, %v2158
    %v2160 = vand.u32 %v2159, 4294901760
    %2161 = vmatpush1.msra.mxu0 %v2160
    %v2162 = vand.u32 %v146, 4294901760
    %v2163 = vsub.f32 %v146, %v2162
    %v2164 = vand.u32 %v2163, 4294901760
    %v2165 = vsub.f32 %v2163, %v2164
    %v2166 = vand.u32 %v2165, 4294901760
    %2167 = vmatprep.subr.mxu0 %v2166
    %v2168 = vand.u32 %v145, 4294901760
    %v2169 = vsub.f32 %v145, %v2168
    %v2170 = vand.u32 %v2169, 4294901760
    %v2171 = vsub.f32 %v2169, %v2170
    %v2172 = vand.u32 %v2171, 4294901760
    %2173 = vmatpush1.msra.mxu0 %v2172
    %v2174 = vand.u32 %v148, 4294901760
    %v2175 = vsub.f32 %v148, %v2174
    %v2176 = vand.u32 %v2175, 4294901760
    %v2177 = vsub.f32 %v2175, %v2176
    %v2178 = vand.u32 %v2177, 4294901760
    %2179 = vmatprep.subr.mxu0 %v2178
    %v2180 = vand.u32 %v147, 4294901760
    %v2181 = vsub.f32 %v147, %v2180
    %v2182 = vand.u32 %v2181, 4294901760
    %v2183 = vsub.f32 %v2181, %v2182
    %v2184 = vand.u32 %v2183, 4294901760
    %2185 = vmatpush1.msra.mxu0 %v2184
    %v2186 = vand.u32 %v150, 4294901760
    %v2187 = vsub.f32 %v150, %v2186
    %v2188 = vand.u32 %v2187, 4294901760
    %v2189 = vsub.f32 %v2187, %v2188
    %v2190 = vand.u32 %v2189, 4294901760
    %2191 = vmatprep.subr.mxu0 %v2190
    %v2192 = vand.u32 %v149, 4294901760
    %v2193 = vsub.f32 %v149, %v2192
    %v2194 = vand.u32 %v2193, 4294901760
    %v2195 = vsub.f32 %v2193, %v2194
    %v2196 = vand.u32 %v2195, 4294901760
    %2197 = vmatpush1.msra.mxu0 %v2196
    %v2198 = vand.u32 %v152, 4294901760
    %v2199 = vsub.f32 %v152, %v2198
    %v2200 = vand.u32 %v2199, 4294901760
    %v2201 = vsub.f32 %v2199, %v2200
    %v2202 = vand.u32 %v2201, 4294901760
    %2203 = vmatprep.subr.mxu0 %v2202
    %v2204 = vand.u32 %v151, 4294901760
    %v2205 = vsub.f32 %v151, %v2204
    %v2206 = vand.u32 %v2205, 4294901760
    %v2207 = vsub.f32 %v2205, %v2206
    %v2208 = vand.u32 %v2207, 4294901760
    %2209 = vmatpush1.msra.mxu0 %v2208
    %v2210 = vand.u32 %v154, 4294901760
    %v2211 = vsub.f32 %v154, %v2210
    %v2212 = vand.u32 %v2211, 4294901760
    %v2213 = vsub.f32 %v2211, %v2212
    %v2214 = vand.u32 %v2213, 4294901760
    %2215 = vmatprep.subr.mxu0 %v2214
    %v2216 = vand.u32 %v153, 4294901760
    %v2217 = vsub.f32 %v153, %v2216
    %v2218 = vand.u32 %v2217, 4294901760
    %v2219 = vsub.f32 %v2217, %v2218
    %v2220 = vand.u32 %v2219, 4294901760
    %2221 = vmatpush1.msra.mxu0 %v2220
    %v2222 = vand.u32 %v156, 4294901760
    %v2223 = vsub.f32 %v156, %v2222
    %v2224 = vand.u32 %v2223, 4294901760
    %v2225 = vsub.f32 %v2223, %v2224
    %v2226 = vand.u32 %v2225, 4294901760
    %2227 = vmatprep.subr.mxu0 %v2226
    %v2228 = vand.u32 %v155, 4294901760
    %v2229 = vsub.f32 %v155, %v2228
    %v2230 = vand.u32 %v2229, 4294901760
    %v2231 = vsub.f32 %v2229, %v2230
    %v2232 = vand.u32 %v2231, 4294901760
    %2233 = vmatpush1.msra.mxu0 %v2232
    %v2234 = vand.u32 %v158, 4294901760
    %v2235 = vsub.f32 %v158, %v2234
    %v2236 = vand.u32 %v2235, 4294901760
    %v2237 = vsub.f32 %v2235, %v2236
    %v2238 = vand.u32 %v2237, 4294901760
    %2239 = vmatprep.subr.mxu0 %v2238
    %v2240 = vand.u32 %v157, 4294901760
    %v2241 = vsub.f32 %v157, %v2240
    %v2242 = vand.u32 %v2241, 4294901760
    %v2243 = vsub.f32 %v2241, %v2242
    %v2244 = vand.u32 %v2243, 4294901760
    %2245 = vmatpush1.msra.mxu0 %v2244
    %v2246 = vand.u32 %v160, 4294901760
    %v2247 = vsub.f32 %v160, %v2246
    %v2248 = vand.u32 %v2247, 4294901760
    %v2249 = vsub.f32 %v2247, %v2248
    %v2250 = vand.u32 %v2249, 4294901760
    %2251 = vmatprep.subr.mxu0 %v2250
    %v2252 = vand.u32 %v159, 4294901760
    %v2253 = vsub.f32 %v159, %v2252
    %v2254 = vand.u32 %v2253, 4294901760
    %v2255 = vsub.f32 %v2253, %v2254
    %v2256 = vand.u32 %v2255, 4294901760
    %2257 = vmatpush1.msra.mxu0 %v2256
    %v2258 = vand.u32 %v162, 4294901760
    %v2259 = vsub.f32 %v162, %v2258
    %v2260 = vand.u32 %v2259, 4294901760
    %v2261 = vsub.f32 %v2259, %v2260
    %v2262 = vand.u32 %v2261, 4294901760
    %2263 = vmatprep.subr.mxu0 %v2262
    %v2264 = vand.u32 %v161, 4294901760
    %v2265 = vsub.f32 %v161, %v2264
    %v2266 = vand.u32 %v2265, 4294901760
    %v2267 = vsub.f32 %v2265, %v2266
    %v2268 = vand.u32 %v2267, 4294901760
    %2269 = vmatpush1.msra.mxu0 %v2268
    %2270 = vmatprep.subr.mxu0 0.0
    %2271 = vmatpush1.msra.mxu0 0.0
    %2272 = vmatprep.subr.mxu0 0.0
    %2273 = vmatpush1.msra.mxu0 0.0
    %2274 = vmatprep.subr.mxu0 0.0
    %2275 = vmatpush1.msra.mxu0 0.0
    %2276 = vmatprep.subr.mxu0 0.0
    %2277 = vmatpush1.msra.mxu0 0.0
    %2278 = vmatprep.subr.mxu0 0.0
    %2279 = vmatpush1.msra.mxu0 0.0
    %2280 = vmatprep.subr.mxu0 0.0
    %2281 = vmatpush1.msra.mxu0 0.0
    %2282 = vmatprep.subr.mxu0 0.0
    %2283 = vmatpush1.msra.mxu0 0.0
    %2284 = vmatprep.subr.mxu0 0.0
    %2285 = vmatpush1.msra.mxu0 0.0
    %2286 = vmatprep.subr.mxu0 0.0
    %2287 = vmatpush1.msra.mxu0 0.0
    %2288 = vmatprep.subr.mxu0 0.0
    %2289 = vmatpush1.msra.mxu0 0.0
    %2290 = vmatprep.subr.mxu0 0.0
    %2291 = vmatpush1.msra.mxu0 0.0
    %2292 = vmatprep.subr.mxu0 0.0
    %2293 = vmatpush1.msra.mxu0 0.0
    %2294 = vmatprep.subr.mxu0 0.0
    %2295 = vmatpush1.msra.mxu0 0.0
    %2296 = vmatprep.subr.mxu0 0.0
    %2297 = vmatpush1.msra.mxu0 0.0
    %2298 = vmatprep.subr.mxu0 0.0
    %2299 = vmatpush1.msra.mxu0 0.0
    %2300 = vmatprep.subr.mxu0 0.0
    %2301 = vmatpush1.msra.mxu0 0.0
    %2302 = vmatprep.mubr.f32.mxu0 0.0
    %v2303 = vand.u32 %v45, 4294901760
    %2304 = vmatmul.mubr.f32.gmra.mrb[0].mxu0 %v2303
    %v2305 = vpop.f32.mrb[0].mxu0
    %v2306 = vadd.f32 %v1997, %v2305
    %v2307 = vpop.f32.mrb[0].mxu0
    %v2308 = vadd.f32 %v1999, %v2307
    %2309 = vmatprep.mubr.f32.mxu0 0.0
    %v2310 = vand.u32 %v48, 4294901760
    %2311 = vmatmul.mubr.f32.gmra.mrb[0].mxu0 %v2310
    %v2312 = vpop.f32.mrb[0].mxu0
    %v2313 = vadd.f32 %v2008, %v2312
    %v2314 = vpop.f32.mrb[0].mxu0
    %v2315 = vadd.f32 %v2010, %v2314
    %2316 = vmatprep.mubr.f32.mxu0 0.0
    %v2317 = vand.u32 %v51, 4294901760
    %2318 = vmatmul.mubr.f32.gmra.mrb[0].mxu0 %v2317
    %v2319 = vpop.f32.mrb[0].mxu0
    %v2320 = vadd.f32 %v2019, %v2319
    %v2321 = vpop.f32.mrb[0].mxu0
    %v2322 = vadd.f32 %v2021, %v2321
    %2323 = vmatprep.mubr.f32.mxu0 0.0
    %v2324 = vand.u32 %v54, 4294901760
    %2325 = vmatmul.mubr.f32.gmra.mrb[0].mxu0 %v2324
    %v2326 = vpop.f32.mrb[0].mxu0
    %v2327 = vadd.f32 %v2030, %v2326
    %v2328 = vpop.f32.mrb[0].mxu0
    %v2329 = vadd.f32 %v2032, %v2328
    %2330 = vmatprep.mubr.f32.mxu0 0.0
    %v2331 = vand.u32 %v57, 4294901760
    %2332 = vmatmul.mubr.f32.gmra.mrb[0].mxu0 %v2331
    %v2333 = vpop.f32.mrb[0].mxu0
    %v2334 = vadd.f32 %v2041, %v2333
    %v2335 = vpop.f32.mrb[0].mxu0
    %v2336 = vadd.f32 %v2043, %v2335
    %2337 = vmatprep.mubr.f32.mxu0 0.0
    %v2338 = vand.u32 %v60, 4294901760
    %2339 = vmatmul.mubr.f32.gmra.mrb[0].mxu0 %v2338
    %v2340 = vpop.f32.mrb[0].mxu0
    %v2341 = vadd.f32 %v2052, %v2340
    %v2342 = vpop.f32.mrb[0].mxu0
    %v2343 = vadd.f32 %v2054, %v2342
    %2344 = vmatprep.mubr.f32.mxu0 0.0
    %v2345 = vand.u32 %v63, 4294901760
    %2346 = vmatmul.mubr.f32.gmra.mrb[0].mxu0 %v2345
    %v2347 = vpop.f32.mrb[0].mxu0
    %v2348 = vadd.f32 %v2063, %v2347
    %v2349 = vpop.f32.mrb[0].mxu0
    %v2350 = vadd.f32 %v2065, %v2349
    %2351 = vmatprep.mubr.f32.mxu0 0.0
    %v2352 = vand.u32 %v66, 4294901760
    %2353 = vmatmul.mubr.f32.gmra.mrb[0].mxu0 %v2352
    %v2354 = vpop.f32.mrb[0].mxu0
    %v2355 = vadd.f32 %v2074, %v2354
    %v2356 = vpop.f32.mrb[0].mxu0
    %v2357 = vadd.f32 %v2076, %v2356
    %2358 = vdwg.mxu0
    %v2359 = vand.u32 %v132, 4294901760
    %v2360 = vsub.f32 %v132, %v2359
    %2361 = vmatprep.subr.mxu0 %v2360
    %v2362 = vand.u32 %v131, 4294901760
    %v2363 = vsub.f32 %v131, %v2362
    %2364 = vmatpush1.msra.mxu0 %v2363
    %v2365 = vand.u32 %v134, 4294901760
    %v2366 = vsub.f32 %v134, %v2365
    %2367 = vmatprep.subr.mxu0 %v2366
    %v2368 = vand.u32 %v133, 4294901760
    %v2369 = vsub.f32 %v133, %v2368
    %2370 = vmatpush1.msra.mxu0 %v2369
    %v2371 = vand.u32 %v136, 4294901760
    %v2372 = vsub.f32 %v136, %v2371
    %2373 = vmatprep.subr.mxu0 %v2372
    %v2374 = vand.u32 %v135, 4294901760
    %v2375 = vsub.f32 %v135, %v2374
    %2376 = vmatpush1.msra.mxu0 %v2375
    %v2377 = vand.u32 %v138, 4294901760
    %v2378 = vsub.f32 %v138, %v2377
    %2379 = vmatprep.subr.mxu0 %v2378
    %v2380 = vand.u32 %v137, 4294901760
    %v2381 = vsub.f32 %v137, %v2380
    %2382 = vmatpush1.msra.mxu0 %v2381
    %v2383 = vand.u32 %v140, 4294901760
    %v2384 = vsub.f32 %v140, %v2383
    %2385 = vmatprep.subr.mxu0 %v2384
    %v2386 = vand.u32 %v139, 4294901760
    %v2387 = vsub.f32 %v139, %v2386
    %2388 = vmatpush1.msra.mxu0 %v2387
    %v2389 = vand.u32 %v142, 4294901760
    %v2390 = vsub.f32 %v142, %v2389
    %2391 = vmatprep.subr.mxu0 %v2390
    %v2392 = vand.u32 %v141, 4294901760
    %v2393 = vsub.f32 %v141, %v2392
    %2394 = vmatpush1.msra.mxu0 %v2393
    %v2395 = vand.u32 %v144, 4294901760
    %v2396 = vsub.f32 %v144, %v2395
    %2397 = vmatprep.subr.mxu0 %v2396
    %v2398 = vand.u32 %v143, 4294901760
    %v2399 = vsub.f32 %v143, %v2398
    %2400 = vmatpush1.msra.mxu0 %v2399
    %v2401 = vand.u32 %v146, 4294901760
    %v2402 = vsub.f32 %v146, %v2401
    %2403 = vmatprep.subr.mxu0 %v2402
    %v2404 = vand.u32 %v145, 4294901760
    %v2405 = vsub.f32 %v145, %v2404
    %2406 = vmatpush1.msra.mxu0 %v2405
    %v2407 = vand.u32 %v148, 4294901760
    %v2408 = vsub.f32 %v148, %v2407
    %2409 = vmatprep.subr.mxu0 %v2408
    %v2410 = vand.u32 %v147, 4294901760
    %v2411 = vsub.f32 %v147, %v2410
    %2412 = vmatpush1.msra.mxu0 %v2411
    %v2413 = vand.u32 %v150, 4294901760
    %v2414 = vsub.f32 %v150, %v2413
    %2415 = vmatprep.subr.mxu0 %v2414
    %v2416 = vand.u32 %v149, 4294901760
    %v2417 = vsub.f32 %v149, %v2416
    %2418 = vmatpush1.msra.mxu0 %v2417
    %v2419 = vand.u32 %v152, 4294901760
    %v2420 = vsub.f32 %v152, %v2419
    %2421 = vmatprep.subr.mxu0 %v2420
    %v2422 = vand.u32 %v151, 4294901760
    %v2423 = vsub.f32 %v151, %v2422
    %2424 = vmatpush1.msra.mxu0 %v2423
    %v2425 = vand.u32 %v154, 4294901760
    %v2426 = vsub.f32 %v154, %v2425
    %2427 = vmatprep.subr.mxu0 %v2426
    %v2428 = vand.u32 %v153, 4294901760
    %v2429 = vsub.f32 %v153, %v2428
    %2430 = vmatpush1.msra.mxu0 %v2429
    %v2431 = vand.u32 %v156, 4294901760
    %v2432 = vsub.f32 %v156, %v2431
    %2433 = vmatprep.subr.mxu0 %v2432
    %v2434 = vand.u32 %v155, 4294901760
    %v2435 = vsub.f32 %v155, %v2434
    %2436 = vmatpush1.msra.mxu0 %v2435
    %v2437 = vand.u32 %v158, 4294901760
    %v2438 = vsub.f32 %v158, %v2437
    %2439 = vmatprep.subr.mxu0 %v2438
    %v2440 = vand.u32 %v157, 4294901760
    %v2441 = vsub.f32 %v157, %v2440
    %2442 = vmatpush1.msra.mxu0 %v2441
    %v2443 = vand.u32 %v160, 4294901760
    %v2444 = vsub.f32 %v160, %v2443
    %2445 = vmatprep.subr.mxu0 %v2444
    %v2446 = vand.u32 %v159, 4294901760
    %v2447 = vsub.f32 %v159, %v2446
    %2448 = vmatpush1.msra.mxu0 %v2447
    %v2449 = vand.u32 %v162, 4294901760
    %v2450 = vsub.f32 %v162, %v2449
    %2451 = vmatprep.subr.mxu0 %v2450
    %v2452 = vand.u32 %v161, 4294901760
    %v2453 = vsub.f32 %v161, %v2452
    %2454 = vmatpush1.msra.mxu0 %v2453
    %2455 = vmatprep.subr.mxu0 0.0
    %2456 = vmatpush1.msra.mxu0 0.0
    %2457 = vmatprep.subr.mxu0 0.0
    %2458 = vmatpush1.msra.mxu0 0.0
    %2459 = vmatprep.subr.mxu0 0.0
    %2460 = vmatpush1.msra.mxu0 0.0
    %2461 = vmatprep.subr.mxu0 0.0
    %2462 = vmatpush1.msra.mxu0 0.0
    %2463 = vmatprep.subr.mxu0 0.0
    %2464 = vmatpush1.msra.mxu0 0.0
    %2465 = vmatprep.subr.mxu0 0.0
    %2466 = vmatpush1.msra.mxu0 0.0
    %2467 = vmatprep.subr.mxu0 0.0
    %2468 = vmatpush1.msra.mxu0 0.0
    %2469 = vmatprep.subr.mxu0 0.0
    %2470 = vmatpush1.msra.mxu0 0.0
    %2471 = vmatprep.subr.mxu0 0.0
    %2472 = vmatpush1.msra.mxu0 0.0
    %2473 = vmatprep.subr.mxu0 0.0
    %2474 = vmatpush1.msra.mxu0 0.0
    %2475 = vmatprep.subr.mxu0 0.0
    %2476 = vmatpush1.msra.mxu0 0.0
    %2477 = vmatprep.subr.mxu0 0.0
    %2478 = vmatpush1.msra.mxu0 0.0
    %2479 = vmatprep.subr.mxu0 0.0
    %2480 = vmatpush1.msra.mxu0 0.0
    %2481 = vmatprep.subr.mxu0 0.0
    %2482 = vmatpush1.msra.mxu0 0.0
    %2483 = vmatprep.subr.mxu0 0.0
    %2484 = vmatpush1.msra.mxu0 0.0
    %2485 = vmatprep.subr.mxu0 0.0
    %2486 = vmatpush1.msra.mxu0 0.0
    %2487 = vmatprep.mubr.f32.mxu0 0.0
    %v2488 = vand.u32 %v45, 4294901760
    %v2489 = vsub.f32 %v45, %v2488
    %2490 = vmatmul.mubr.f32.gmra.mrb[0].mxu0 %v2489
    %v2491 = vpop.f32.mrb[0].mxu0
    %v2492 = vadd.f32 %v2306, %v2491
    %v2493 = vpop.f32.mrb[0].mxu0
    %v2494 = vadd.f32 %v2308, %v2493
    %2495 = vmatprep.mubr.f32.mxu0 0.0
    %v2496 = vand.u32 %v48, 4294901760
    %v2497 = vsub.f32 %v48, %v2496
    %2498 = vmatmul.mubr.f32.gmra.mrb[0].mxu0 %v2497
    %v2499 = vpop.f32.mrb[0].mxu0
    %v2500 = vadd.f32 %v2313, %v2499
    %v2501 = vpop.f32.mrb[0].mxu0
    %v2502 = vadd.f32 %v2315, %v2501
    %2503 = vmatprep.mubr.f32.mxu0 0.0
    %v2504 = vand.u32 %v51, 4294901760
    %v2505 = vsub.f32 %v51, %v2504
    %2506 = vmatmul.mubr.f32.gmra.mrb[0].mxu0 %v2505
    %v2507 = vpop.f32.mrb[0].mxu0
    %v2508 = vadd.f32 %v2320, %v2507
    %v2509 = vpop.f32.mrb[0].mxu0
    %v2510 = vadd.f32 %v2322, %v2509
    %2511 = vmatprep.mubr.f32.mxu0 0.0
    %v2512 = vand.u32 %v54, 4294901760
    %v2513 = vsub.f32 %v54, %v2512
    %2514 = vmatmul.mubr.f32.gmra.mrb[0].mxu0 %v2513
    %v2515 = vpop.f32.mrb[0].mxu0
    %v2516 = vadd.f32 %v2327, %v2515
    %v2517 = vpop.f32.mrb[0].mxu0
    %v2518 = vadd.f32 %v2329, %v2517
    %2519 = vmatprep.mubr.f32.mxu0 0.0
    %v2520 = vand.u32 %v57, 4294901760
    %v2521 = vsub.f32 %v57, %v2520
    %2522 = vmatmul.mubr.f32.gmra.mrb[0].mxu0 %v2521
    %v2523 = vpop.f32.mrb[0].mxu0
    %v2524 = vadd.f32 %v2334, %v2523
    %v2525 = vpop.f32.mrb[0].mxu0
    %v2526 = vadd.f32 %v2336, %v2525
    %2527 = vmatprep.mubr.f32.mxu0 0.0
    %v2528 = vand.u32 %v60, 4294901760
    %v2529 = vsub.f32 %v60, %v2528
    %2530 = vmatmul.mubr.f32.gmra.mrb[0].mxu0 %v2529
    %v2531 = vpop.f32.mrb[0].mxu0
    %v2532 = vadd.f32 %v2341, %v2531
    %v2533 = vpop.f32.mrb[0].mxu0
    %v2534 = vadd.f32 %v2343, %v2533
    %2535 = vmatprep.mubr.f32.mxu0 0.0
    %v2536 = vand.u32 %v63, 4294901760
    %v2537 = vsub.f32 %v63, %v2536
    %2538 = vmatmul.mubr.f32.gmra.mrb[0].mxu0 %v2537
    %v2539 = vpop.f32.mrb[0].mxu0
    %v2540 = vadd.f32 %v2348, %v2539
    %v2541 = vpop.f32.mrb[0].mxu0
    %v2542 = vadd.f32 %v2350, %v2541
    %2543 = vmatprep.mubr.f32.mxu0 0.0
    %v2544 = vand.u32 %v66, 4294901760
    %v2545 = vsub.f32 %v66, %v2544
    %2546 = vmatmul.mubr.f32.gmra.mrb[0].mxu0 %v2545
    %v2547 = vpop.f32.mrb[0].mxu0
    %v2548 = vadd.f32 %v2355, %v2547
    %v2549 = vpop.f32.mrb[0].mxu0
    %v2550 = vadd.f32 %v2357, %v2549
    %2551 = vdwg.mxu0
    %v2552 = vand.u32 %v132, 4294901760
    %2553 = vmatprep.subr.mxu0 %v2552
    %v2554 = vand.u32 %v131, 4294901760
    %2555 = vmatpush1.msra.mxu0 %v2554
    %v2556 = vand.u32 %v134, 4294901760
    %2557 = vmatprep.subr.mxu0 %v2556
    %v2558 = vand.u32 %v133, 4294901760
    %2559 = vmatpush1.msra.mxu0 %v2558
    %v2560 = vand.u32 %v136, 4294901760
    %2561 = vmatprep.subr.mxu0 %v2560
    %v2562 = vand.u32 %v135, 4294901760
    %2563 = vmatpush1.msra.mxu0 %v2562
    %v2564 = vand.u32 %v138, 4294901760
    %2565 = vmatprep.subr.mxu0 %v2564
    %v2566 = vand.u32 %v137, 4294901760
    %2567 = vmatpush1.msra.mxu0 %v2566
    %v2568 = vand.u32 %v140, 4294901760
    %2569 = vmatprep.subr.mxu0 %v2568
    %v2570 = vand.u32 %v139, 4294901760
    %2571 = vmatpush1.msra.mxu0 %v2570
    %v2572 = vand.u32 %v142, 4294901760
    %2573 = vmatprep.subr.mxu0 %v2572
    %v2574 = vand.u32 %v141, 4294901760
    %2575 = vmatpush1.msra.mxu0 %v2574
    %v2576 = vand.u32 %v144, 4294901760
    %2577 = vmatprep.subr.mxu0 %v2576
    %v2578 = vand.u32 %v143, 4294901760
    %2579 = vmatpush1.msra.mxu0 %v2578
    %v2580 = vand.u32 %v146, 4294901760
    %2581 = vmatprep.subr.mxu0 %v2580
    %v2582 = vand.u32 %v145, 4294901760
    %2583 = vmatpush1.msra.mxu0 %v2582
    %v2584 = vand.u32 %v148, 4294901760
    %2585 = vmatprep.subr.mxu0 %v2584
    %v2586 = vand.u32 %v147, 4294901760
    %2587 = vmatpush1.msra.mxu0 %v2586
    %v2588 = vand.u32 %v150, 4294901760
    %2589 = vmatprep.subr.mxu0 %v2588
    %v2590 = vand.u32 %v149, 4294901760
    %2591 = vmatpush1.msra.mxu0 %v2590
    %v2592 = vand.u32 %v152, 4294901760
    %2593 = vmatprep.subr.mxu0 %v2592
    %v2594 = vand.u32 %v151, 4294901760
    %2595 = vmatpush1.msra.mxu0 %v2594
    %v2596 = vand.u32 %v154, 4294901760
    %2597 = vmatprep.subr.mxu0 %v2596
    %v2598 = vand.u32 %v153, 4294901760
    %2599 = vmatpush1.msra.mxu0 %v2598
    %v2600 = vand.u32 %v156, 4294901760
    %2601 = vmatprep.subr.mxu0 %v2600
    %v2602 = vand.u32 %v155, 4294901760
    %2603 = vmatpush1.msra.mxu0 %v2602
    %v2604 = vand.u32 %v158, 4294901760
    %2605 = vmatprep.subr.mxu0 %v2604
    %v2606 = vand.u32 %v157, 4294901760
    %2607 = vmatpush1.msra.mxu0 %v2606
    %v2608 = vand.u32 %v160, 4294901760
    %2609 = vmatprep.subr.mxu0 %v2608
    %v2610 = vand.u32 %v159, 4294901760
    %2611 = vmatpush1.msra.mxu0 %v2610
    %v2612 = vand.u32 %v162, 4294901760
    %2613 = vmatprep.subr.mxu0 %v2612
    %v2614 = vand.u32 %v161, 4294901760
    %2615 = vmatpush1.msra.mxu0 %v2614
    %2616 = vmatprep.subr.mxu0 0.0
    %2617 = vmatpush1.msra.mxu0 0.0
    %2618 = vmatprep.subr.mxu0 0.0
    %2619 = vmatpush1.msra.mxu0 0.0
    %2620 = vmatprep.subr.mxu0 0.0
    %2621 = vmatpush1.msra.mxu0 0.0
    %2622 = vmatprep.subr.mxu0 0.0
    %2623 = vmatpush1.msra.mxu0 0.0
    %2624 = vmatprep.subr.mxu0 0.0
    %2625 = vmatpush1.msra.mxu0 0.0
    %2626 = vmatprep.subr.mxu0 0.0
    %2627 = vmatpush1.msra.mxu0 0.0
    %2628 = vmatprep.subr.mxu0 0.0
    %2629 = vmatpush1.msra.mxu0 0.0
    %2630 = vmatprep.subr.mxu0 0.0
    %2631 = vmatpush1.msra.mxu0 0.0
    %2632 = vmatprep.subr.mxu0 0.0
    %2633 = vmatpush1.msra.mxu0 0.0
    %2634 = vmatprep.subr.mxu0 0.0
    %2635 = vmatpush1.msra.mxu0 0.0
    %2636 = vmatprep.subr.mxu0 0.0
    %2637 = vmatpush1.msra.mxu0 0.0
    %2638 = vmatprep.subr.mxu0 0.0
    %2639 = vmatpush1.msra.mxu0 0.0
    %2640 = vmatprep.subr.mxu0 0.0
    %2641 = vmatpush1.msra.mxu0 0.0
    %2642 = vmatprep.subr.mxu0 0.0
    %2643 = vmatpush1.msra.mxu0 0.0
    %2644 = vmatprep.subr.mxu0 0.0
    %2645 = vmatpush1.msra.mxu0 0.0
    %2646 = vmatprep.subr.mxu0 0.0
    %2647 = vmatpush1.msra.mxu0 0.0
    %2648 = vmatprep.mubr.f32.mxu0 0.0
    %v2649 = vand.u32 %v45, 4294901760
    %v2650 = vsub.f32 %v45, %v2649
    %v2651 = vand.u32 %v2650, 4294901760
    %2652 = vmatmul.mubr.f32.gmra.mrb[0].mxu0 %v2651
    %v2653 = vpop.f32.mrb[0].mxu0
    %v2654 = vadd.f32 %v2492, %v2653
    %v2655 = vpop.f32.mrb[0].mxu0
    %v2656 = vadd.f32 %v2494, %v2655
    %2657 = vmatprep.mubr.f32.mxu0 0.0
    %v2658 = vand.u32 %v48, 4294901760
    %v2659 = vsub.f32 %v48, %v2658
    %v2660 = vand.u32 %v2659, 4294901760
    %2661 = vmatmul.mubr.f32.gmra.mrb[0].mxu0 %v2660
    %v2662 = vpop.f32.mrb[0].mxu0
    %v2663 = vadd.f32 %v2500, %v2662
    %v2664 = vpop.f32.mrb[0].mxu0
    %v2665 = vadd.f32 %v2502, %v2664
    %2666 = vmatprep.mubr.f32.mxu0 0.0
    %v2667 = vand.u32 %v51, 4294901760
    %v2668 = vsub.f32 %v51, %v2667
    %v2669 = vand.u32 %v2668, 4294901760
    %2670 = vmatmul.mubr.f32.gmra.mrb[0].mxu0 %v2669
    %v2671 = vpop.f32.mrb[0].mxu0
    %v2672 = vadd.f32 %v2508, %v2671
    %v2673 = vpop.f32.mrb[0].mxu0
    %v2674 = vadd.f32 %v2510, %v2673
    %2675 = vmatprep.mubr.f32.mxu0 0.0
    %v2676 = vand.u32 %v54, 4294901760
    %v2677 = vsub.f32 %v54, %v2676
    %v2678 = vand.u32 %v2677, 4294901760
    %2679 = vmatmul.mubr.f32.gmra.mrb[0].mxu0 %v2678
    %v2680 = vpop.f32.mrb[0].mxu0
    %v2681 = vadd.f32 %v2516, %v2680
    %v2682 = vpop.f32.mrb[0].mxu0
    %v2683 = vadd.f32 %v2518, %v2682
    %2684 = vmatprep.mubr.f32.mxu0 0.0
    %v2685 = vand.u32 %v57, 4294901760
    %v2686 = vsub.f32 %v57, %v2685
    %v2687 = vand.u32 %v2686, 4294901760
    %2688 = vmatmul.mubr.f32.gmra.mrb[0].mxu0 %v2687
    %v2689 = vpop.f32.mrb[0].mxu0
    %v2690 = vadd.f32 %v2524, %v2689
    %v2691 = vpop.f32.mrb[0].mxu0
    %v2692 = vadd.f32 %v2526, %v2691
    %2693 = vmatprep.mubr.f32.mxu0 0.0
    %v2694 = vand.u32 %v60, 4294901760
    %v2695 = vsub.f32 %v60, %v2694
    %v2696 = vand.u32 %v2695, 4294901760
    %2697 = vmatmul.mubr.f32.gmra.mrb[0].mxu0 %v2696
    %v2698 = vpop.f32.mrb[0].mxu0
    %v2699 = vadd.f32 %v2532, %v2698
    %v2700 = vpop.f32.mrb[0].mxu0
    %v2701 = vadd.f32 %v2534, %v2700
    %2702 = vmatprep.mubr.f32.mxu0 0.0
    %v2703 = vand.u32 %v63, 4294901760
    %v2704 = vsub.f32 %v63, %v2703
    %v2705 = vand.u32 %v2704, 4294901760
    %2706 = vmatmul.mubr.f32.gmra.mrb[0].mxu0 %v2705
    %v2707 = vpop.f32.mrb[0].mxu0
    %v2708 = vadd.f32 %v2540, %v2707
    %v2709 = vpop.f32.mrb[0].mxu0
    %v2710 = vadd.f32 %v2542, %v2709
    %2711 = vmatprep.mubr.f32.mxu0 0.0
    %v2712 = vand.u32 %v66, 4294901760
    %v2713 = vsub.f32 %v66, %v2712
    %v2714 = vand.u32 %v2713, 4294901760
    %2715 = vmatmul.mubr.f32.gmra.mrb[0].mxu0 %v2714
    %v2716 = vpop.f32.mrb[0].mxu0
    %v2717 = vadd.f32 %v2548, %v2716
    %v2718 = vpop.f32.mrb[0].mxu0
    %v2719 = vadd.f32 %v2550, %v2718
    %2720 = vdwg.mxu0
    %v2721 = vand.u32 %v132, 4294901760
    %v2722 = vsub.f32 %v132, %v2721
    %v2723 = vand.u32 %v2722, 4294901760
    %2724 = vmatprep.subr.mxu0 %v2723
    %v2725 = vand.u32 %v131, 4294901760
    %v2726 = vsub.f32 %v131, %v2725
    %v2727 = vand.u32 %v2726, 4294901760
    %2728 = vmatpush1.msra.mxu0 %v2727
    %v2729 = vand.u32 %v134, 4294901760
    %v2730 = vsub.f32 %v134, %v2729
    %v2731 = vand.u32 %v2730, 4294901760
    %2732 = vmatprep.subr.mxu0 %v2731
    %v2733 = vand.u32 %v133, 4294901760
    %v2734 = vsub.f32 %v133, %v2733
    %v2735 = vand.u32 %v2734, 4294901760
    %2736 = vmatpush1.msra.mxu0 %v2735
    %v2737 = vand.u32 %v136, 4294901760
    %v2738 = vsub.f32 %v136, %v2737
    %v2739 = vand.u32 %v2738, 4294901760
    %2740 = vmatprep.subr.mxu0 %v2739
    %v2741 = vand.u32 %v135, 4294901760
    %v2742 = vsub.f32 %v135, %v2741
    %v2743 = vand.u32 %v2742, 4294901760
    %2744 = vmatpush1.msra.mxu0 %v2743
    %v2745 = vand.u32 %v138, 4294901760
    %v2746 = vsub.f32 %v138, %v2745
    %v2747 = vand.u32 %v2746, 4294901760
    %2748 = vmatprep.subr.mxu0 %v2747
    %v2749 = vand.u32 %v137, 4294901760
    %v2750 = vsub.f32 %v137, %v2749
    %v2751 = vand.u32 %v2750, 4294901760
    %2752 = vmatpush1.msra.mxu0 %v2751
    %v2753 = vand.u32 %v140, 4294901760
    %v2754 = vsub.f32 %v140, %v2753
    %v2755 = vand.u32 %v2754, 4294901760
    %2756 = vmatprep.subr.mxu0 %v2755
    %v2757 = vand.u32 %v139, 4294901760
    %v2758 = vsub.f32 %v139, %v2757
    %v2759 = vand.u32 %v2758, 4294901760
    %2760 = vmatpush1.msra.mxu0 %v2759
    %v2761 = vand.u32 %v142, 4294901760
    %v2762 = vsub.f32 %v142, %v2761
    %v2763 = vand.u32 %v2762, 4294901760
    %2764 = vmatprep.subr.mxu0 %v2763
    %v2765 = vand.u32 %v141, 4294901760
    %v2766 = vsub.f32 %v141, %v2765
    %v2767 = vand.u32 %v2766, 4294901760
    %2768 = vmatpush1.msra.mxu0 %v2767
    %v2769 = vand.u32 %v144, 4294901760
    %v2770 = vsub.f32 %v144, %v2769
    %v2771 = vand.u32 %v2770, 4294901760
    %2772 = vmatprep.subr.mxu0 %v2771
    %v2773 = vand.u32 %v143, 4294901760
    %v2774 = vsub.f32 %v143, %v2773
    %v2775 = vand.u32 %v2774, 4294901760
    %2776 = vmatpush1.msra.mxu0 %v2775
    %v2777 = vand.u32 %v146, 4294901760
    %v2778 = vsub.f32 %v146, %v2777
    %v2779 = vand.u32 %v2778, 4294901760
    %2780 = vmatprep.subr.mxu0 %v2779
    %v2781 = vand.u32 %v145, 4294901760
    %v2782 = vsub.f32 %v145, %v2781
    %v2783 = vand.u32 %v2782, 4294901760
    %2784 = vmatpush1.msra.mxu0 %v2783
    %v2785 = vand.u32 %v148, 4294901760
    %v2786 = vsub.f32 %v148, %v2785
    %v2787 = vand.u32 %v2786, 4294901760
    %2788 = vmatprep.subr.mxu0 %v2787
    %v2789 = vand.u32 %v147, 4294901760
    %v2790 = vsub.f32 %v147, %v2789
    %v2791 = vand.u32 %v2790, 4294901760
    %2792 = vmatpush1.msra.mxu0 %v2791
    %v2793 = vand.u32 %v150, 4294901760
    %v2794 = vsub.f32 %v150, %v2793
    %v2795 = vand.u32 %v2794, 4294901760
    %2796 = vmatprep.subr.mxu0 %v2795
    %v2797 = vand.u32 %v149, 4294901760
    %v2798 = vsub.f32 %v149, %v2797
    %v2799 = vand.u32 %v2798, 4294901760
    %2800 = vmatpush1.msra.mxu0 %v2799
    %v2801 = vand.u32 %v152, 4294901760
    %v2802 = vsub.f32 %v152, %v2801
    %v2803 = vand.u32 %v2802, 4294901760
    %2804 = vmatprep.subr.mxu0 %v2803
    %v2805 = vand.u32 %v151, 4294901760
    %v2806 = vsub.f32 %v151, %v2805
    %v2807 = vand.u32 %v2806, 4294901760
    %2808 = vmatpush1.msra.mxu0 %v2807
    %v2809 = vand.u32 %v154, 4294901760
    %v2810 = vsub.f32 %v154, %v2809
    %v2811 = vand.u32 %v2810, 4294901760
    %2812 = vmatprep.subr.mxu0 %v2811
    %v2813 = vand.u32 %v153, 4294901760
    %v2814 = vsub.f32 %v153, %v2813
    %v2815 = vand.u32 %v2814, 4294901760
    %2816 = vmatpush1.msra.mxu0 %v2815
    %v2817 = vand.u32 %v156, 4294901760
    %v2818 = vsub.f32 %v156, %v2817
    %v2819 = vand.u32 %v2818, 4294901760
    %2820 = vmatprep.subr.mxu0 %v2819
    %v2821 = vand.u32 %v155, 4294901760
    %v2822 = vsub.f32 %v155, %v2821
    %v2823 = vand.u32 %v2822, 4294901760
    %2824 = vmatpush1.msra.mxu0 %v2823
    %v2825 = vand.u32 %v158, 4294901760
    %v2826 = vsub.f32 %v158, %v2825
    %v2827 = vand.u32 %v2826, 4294901760
    %2828 = vmatprep.subr.mxu0 %v2827
    %v2829 = vand.u32 %v157, 4294901760
    %v2830 = vsub.f32 %v157, %v2829
    %v2831 = vand.u32 %v2830, 4294901760
    %2832 = vmatpush1.msra.mxu0 %v2831
    %v2833 = vand.u32 %v160, 4294901760
    %v2834 = vsub.f32 %v160, %v2833
    %v2835 = vand.u32 %v2834, 4294901760
    %2836 = vmatprep.subr.mxu0 %v2835
    %v2837 = vand.u32 %v159, 4294901760
    %v2838 = vsub.f32 %v159, %v2837
    %v2839 = vand.u32 %v2838, 4294901760
    %2840 = vmatpush1.msra.mxu0 %v2839
    %v2841 = vand.u32 %v162, 4294901760
    %v2842 = vsub.f32 %v162, %v2841
    %v2843 = vand.u32 %v2842, 4294901760
    %2844 = vmatprep.subr.mxu0 %v2843
    %v2845 = vand.u32 %v161, 4294901760
    %v2846 = vsub.f32 %v161, %v2845
    %v2847 = vand.u32 %v2846, 4294901760
    %2848 = vmatpush1.msra.mxu0 %v2847
    %2849 = vmatprep.subr.mxu0 0.0
    %2850 = vmatpush1.msra.mxu0 0.0
    %2851 = vmatprep.subr.mxu0 0.0
    %2852 = vmatpush1.msra.mxu0 0.0
    %2853 = vmatprep.subr.mxu0 0.0
    %2854 = vmatpush1.msra.mxu0 0.0
    %2855 = vmatprep.subr.mxu0 0.0
    %2856 = vmatpush1.msra.mxu0 0.0
    %2857 = vmatprep.subr.mxu0 0.0
    %2858 = vmatpush1.msra.mxu0 0.0
    %2859 = vmatprep.subr.mxu0 0.0
    %2860 = vmatpush1.msra.mxu0 0.0
    %2861 = vmatprep.subr.mxu0 0.0
    %2862 = vmatpush1.msra.mxu0 0.0
    %2863 = vmatprep.subr.mxu0 0.0
    %2864 = vmatpush1.msra.mxu0 0.0
    %2865 = vmatprep.subr.mxu0 0.0
    %2866 = vmatpush1.msra.mxu0 0.0
    %2867 = vmatprep.subr.mxu0 0.0
    %2868 = vmatpush1.msra.mxu0 0.0
    %2869 = vmatprep.subr.mxu0 0.0
    %2870 = vmatpush1.msra.mxu0 0.0
    %2871 = vmatprep.subr.mxu0 0.0
    %2872 = vmatpush1.msra.mxu0 0.0
    %2873 = vmatprep.subr.mxu0 0.0
    %2874 = vmatpush1.msra.mxu0 0.0
    %2875 = vmatprep.subr.mxu0 0.0
    %2876 = vmatpush1.msra.mxu0 0.0
    %2877 = vmatprep.subr.mxu0 0.0
    %2878 = vmatpush1.msra.mxu0 0.0
    %2879 = vmatprep.subr.mxu0 0.0
    %2880 = vmatpush1.msra.mxu0 0.0
    %2881 = vmatprep.mubr.f32.mxu0 0.0
    %v2882 = vand.u32 %v45, 4294901760
    %2883 = vmatmul.mubr.f32.gmra.mrb[0].mxu0 %v2882
    %v2884 = vpop.f32.mrb[0].mxu0
    %v2885 = vadd.f32 %v2654, %v2884
    %v2886 = vpop.f32.mrb[0].mxu0
    %v2887 = vadd.f32 %v2656, %v2886
    %2888 = vmatprep.mubr.f32.mxu0 0.0
    %v2889 = vand.u32 %v48, 4294901760
    %2890 = vmatmul.mubr.f32.gmra.mrb[0].mxu0 %v2889
    %v2891 = vpop.f32.mrb[0].mxu0
    %v2892 = vadd.f32 %v2663, %v2891
    %v2893 = vpop.f32.mrb[0].mxu0
    %v2894 = vadd.f32 %v2665, %v2893
    %2895 = vmatprep.mubr.f32.mxu0 0.0
    %v2896 = vand.u32 %v51, 4294901760
    %2897 = vmatmul.mubr.f32.gmra.mrb[0].mxu0 %v2896
    %v2898 = vpop.f32.mrb[0].mxu0
    %v2899 = vadd.f32 %v2672, %v2898
    %v2900 = vpop.f32.mrb[0].mxu0
    %v2901 = vadd.f32 %v2674, %v2900
    %2902 = vmatprep.mubr.f32.mxu0 0.0
    %v2903 = vand.u32 %v54, 4294901760
    %2904 = vmatmul.mubr.f32.gmra.mrb[0].mxu0 %v2903
    %v2905 = vpop.f32.mrb[0].mxu0
    %v2906 = vadd.f32 %v2681, %v2905
    %v2907 = vpop.f32.mrb[0].mxu0
    %v2908 = vadd.f32 %v2683, %v2907
    %2909 = vmatprep.mubr.f32.mxu0 0.0
    %v2910 = vand.u32 %v57, 4294901760
    %2911 = vmatmul.mubr.f32.gmra.mrb[0].mxu0 %v2910
    %v2912 = vpop.f32.mrb[0].mxu0
    %v2913 = vadd.f32 %v2690, %v2912
    %v2914 = vpop.f32.mrb[0].mxu0
    %v2915 = vadd.f32 %v2692, %v2914
    %2916 = vmatprep.mubr.f32.mxu0 0.0
    %v2917 = vand.u32 %v60, 4294901760
    %2918 = vmatmul.mubr.f32.gmra.mrb[0].mxu0 %v2917
    %v2919 = vpop.f32.mrb[0].mxu0
    %v2920 = vadd.f32 %v2699, %v2919
    %v2921 = vpop.f32.mrb[0].mxu0
    %v2922 = vadd.f32 %v2701, %v2921
    %2923 = vmatprep.mubr.f32.mxu0 0.0
    %v2924 = vand.u32 %v63, 4294901760
    %2925 = vmatmul.mubr.f32.gmra.mrb[0].mxu0 %v2924
    %v2926 = vpop.f32.mrb[0].mxu0
    %v2927 = vadd.f32 %v2708, %v2926
    %v2928 = vpop.f32.mrb[0].mxu0
    %v2929 = vadd.f32 %v2710, %v2928
    %2930 = vmatprep.mubr.f32.mxu0 0.0
    %v2931 = vand.u32 %v66, 4294901760
    %2932 = vmatmul.mubr.f32.gmra.mrb[0].mxu0 %v2931
    %v2933 = vpop.f32.mrb[0].mxu0
    %v2934 = vadd.f32 %v2717, %v2933
    %v2935 = vpop.f32.mrb[0].mxu0
    %v2936 = vadd.f32 %v2719, %v2935
    %2937 = vdwg.mxu0
    %v2938 = vand.u32 %v132, 4294901760
    %2939 = vmatprep.subr.mxu0 %v2938
    %v2940 = vand.u32 %v131, 4294901760
    %2941 = vmatpush1.msra.mxu0 %v2940
    %v2942 = vand.u32 %v134, 4294901760
    %2943 = vmatprep.subr.mxu0 %v2942
    %v2944 = vand.u32 %v133, 4294901760
    %2945 = vmatpush1.msra.mxu0 %v2944
    %v2946 = vand.u32 %v136, 4294901760
    %2947 = vmatprep.subr.mxu0 %v2946
    %v2948 = vand.u32 %v135, 4294901760
    %2949 = vmatpush1.msra.mxu0 %v2948
    %v2950 = vand.u32 %v138, 4294901760
    %2951 = vmatprep.subr.mxu0 %v2950
    %v2952 = vand.u32 %v137, 4294901760
    %2953 = vmatpush1.msra.mxu0 %v2952
    %v2954 = vand.u32 %v140, 4294901760
    %2955 = vmatprep.subr.mxu0 %v2954
    %v2956 = vand.u32 %v139, 4294901760
    %2957 = vmatpush1.msra.mxu0 %v2956
    %v2958 = vand.u32 %v142, 4294901760
    %2959 = vmatprep.subr.mxu0 %v2958
    %v2960 = vand.u32 %v141, 4294901760
    %2961 = vmatpush1.msra.mxu0 %v2960
    %v2962 = vand.u32 %v144, 4294901760
    %2963 = vmatprep.subr.mxu0 %v2962
    %v2964 = vand.u32 %v143, 4294901760
    %2965 = vmatpush1.msra.mxu0 %v2964
    %v2966 = vand.u32 %v146, 4294901760
    %2967 = vmatprep.subr.mxu0 %v2966
    %v2968 = vand.u32 %v145, 4294901760
    %2969 = vmatpush1.msra.mxu0 %v2968
    %v2970 = vand.u32 %v148, 4294901760
    %2971 = vmatprep.subr.mxu0 %v2970
    %v2972 = vand.u32 %v147, 4294901760
    %2973 = vmatpush1.msra.mxu0 %v2972
    %v2974 = vand.u32 %v150, 4294901760
    %2975 = vmatprep.subr.mxu0 %v2974
    %v2976 = vand.u32 %v149, 4294901760
    %2977 = vmatpush1.msra.mxu0 %v2976
    %v2978 = vand.u32 %v152, 4294901760
    %2979 = vmatprep.subr.mxu0 %v2978
    %v2980 = vand.u32 %v151, 4294901760
    %2981 = vmatpush1.msra.mxu0 %v2980
    %v2982 = vand.u32 %v154, 4294901760
    %2983 = vmatprep.subr.mxu0 %v2982
    %v2984 = vand.u32 %v153, 4294901760
    %2985 = vmatpush1.msra.mxu0 %v2984
    %v2986 = vand.u32 %v156, 4294901760
    %2987 = vmatprep.subr.mxu0 %v2986
    %v2988 = vand.u32 %v155, 4294901760
    %2989 = vmatpush1.msra.mxu0 %v2988
    %v2990 = vand.u32 %v158, 4294901760
    %2991 = vmatprep.subr.mxu0 %v2990
    %v2992 = vand.u32 %v157, 4294901760
    %2993 = vmatpush1.msra.mxu0 %v2992
    %v2994 = vand.u32 %v160, 4294901760
    %2995 = vmatprep.subr.mxu0 %v2994
    %v2996 = vand.u32 %v159, 4294901760
    %2997 = vmatpush1.msra.mxu0 %v2996
    %v2998 = vand.u32 %v162, 4294901760
    %2999 = vmatprep.subr.mxu0 %v2998
    %v3000 = vand.u32 %v161, 4294901760
    %3001 = vmatpush1.msra.mxu0 %v3000
    %3002 = vmatprep.subr.mxu0 0.0
    %3003 = vmatpush1.msra.mxu0 0.0
    %3004 = vmatprep.subr.mxu0 0.0
    %3005 = vmatpush1.msra.mxu0 0.0
    %3006 = vmatprep.subr.mxu0 0.0
    %3007 = vmatpush1.msra.mxu0 0.0
    %3008 = vmatprep.subr.mxu0 0.0
    %3009 = vmatpush1.msra.mxu0 0.0
    %3010 = vmatprep.subr.mxu0 0.0
    %3011 = vmatpush1.msra.mxu0 0.0
    %3012 = vmatprep.subr.mxu0 0.0
    %3013 = vmatpush1.msra.mxu0 0.0
    %3014 = vmatprep.subr.mxu0 0.0
    %3015 = vmatpush1.msra.mxu0 0.0
    %3016 = vmatprep.subr.mxu0 0.0
    %3017 = vmatpush1.msra.mxu0 0.0
    %3018 = vmatprep.subr.mxu0 0.0
    %3019 = vmatpush1.msra.mxu0 0.0
    %3020 = vmatprep.subr.mxu0 0.0
    %3021 = vmatpush1.msra.mxu0 0.0
    %3022 = vmatprep.subr.mxu0 0.0
    %3023 = vmatpush1.msra.mxu0 0.0
    %3024 = vmatprep.subr.mxu0 0.0
    %3025 = vmatpush1.msra.mxu0 0.0
    %3026 = vmatprep.subr.mxu0 0.0
    %3027 = vmatpush1.msra.mxu0 0.0
    %3028 = vmatprep.subr.mxu0 0.0
    %3029 = vmatpush1.msra.mxu0 0.0
    %3030 = vmatprep.subr.mxu0 0.0
    %3031 = vmatpush1.msra.mxu0 0.0
    %3032 = vmatprep.subr.mxu0 0.0
    %3033 = vmatpush1.msra.mxu0 0.0
    %3034 = vmatprep.mubr.f32.mxu0 0.0
    %v3035 = vand.u32 %v45, 4294901760
    %3036 = vmatmul.mubr.f32.gmra.mrb[0].mxu0 %v3035
    %v3037 = vpop.f32.mrb[0].mxu0
    %v3038 = vadd.f32 %v2885, %v3037
    %v3039 = vpop.f32.mrb[0].mxu0
    %v3040 = vadd.f32 %v2887, %v3039
    %3041 = vmatprep.mubr.f32.mxu0 0.0
    %v3042 = vand.u32 %v48, 4294901760
    %3043 = vmatmul.mubr.f32.gmra.mrb[0].mxu0 %v3042
    %v3044 = vpop.f32.mrb[0].mxu0
    %v3045 = vadd.f32 %v2892, %v3044
    %v3046 = vpop.f32.mrb[0].mxu0
    %v3047 = vadd.f32 %v2894, %v3046
    %3048 = vmatprep.mubr.f32.mxu0 0.0
    %v3049 = vand.u32 %v51, 4294901760
    %3050 = vmatmul.mubr.f32.gmra.mrb[0].mxu0 %v3049
    %v3051 = vpop.f32.mrb[0].mxu0
    %v3052 = vadd.f32 %v2899, %v3051
    %v3053 = vpop.f32.mrb[0].mxu0
    %v3054 = vadd.f32 %v2901, %v3053
    %3055 = vmatprep.mubr.f32.mxu0 0.0
    %v3056 = vand.u32 %v54, 4294901760
    %3057 = vmatmul.mubr.f32.gmra.mrb[0].mxu0 %v3056
    %v3058 = vpop.f32.mrb[0].mxu0
    %v3059 = vadd.f32 %v2906, %v3058
    %v3060 = vpop.f32.mrb[0].mxu0
    %v3061 = vadd.f32 %v2908, %v3060
    %3062 = vmatprep.mubr.f32.mxu0 0.0
    %v3063 = vand.u32 %v57, 4294901760
    %3064 = vmatmul.mubr.f32.gmra.mrb[0].mxu0 %v3063
    %v3065 = vpop.f32.mrb[0].mxu0
    %v3066 = vadd.f32 %v2913, %v3065
    %v3067 = vpop.f32.mrb[0].mxu0
    %v3068 = vadd.f32 %v2915, %v3067
    %3069 = vmatprep.mubr.f32.mxu0 0.0
    %v3070 = vand.u32 %v60, 4294901760
    %3071 = vmatmul.mubr.f32.gmra.mrb[0].mxu0 %v3070
    %v3072 = vpop.f32.mrb[0].mxu0
    %v3073 = vadd.f32 %v2920, %v3072
    %v3074 = vpop.f32.mrb[0].mxu0
    %v3075 = vadd.f32 %v2922, %v3074
    %3076 = vmatprep.mubr.f32.mxu0 0.0
    %v3077 = vand.u32 %v63, 4294901760
    %3078 = vmatmul.mubr.f32.gmra.mrb[0].mxu0 %v3077
    %v3079 = vpop.f32.mrb[0].mxu0
    %v3080 = vadd.f32 %v2927, %v3079
    %v3081 = vpop.f32.mrb[0].mxu0
    %v3082 = vadd.f32 %v2929, %v3081
    %3083 = vmatprep.mubr.f32.mxu0 0.0
    %v3084 = vand.u32 %v66, 4294901760
    %3085 = vmatmul.mubr.f32.gmra.mrb[0].mxu0 %v3084
    %v3086 = vpop.f32.mrb[0].mxu0
    %v3087 = vadd.f32 %v2934, %v3086
    %v3088 = vpop.f32.mrb[0].mxu0
    %v3089 = vadd.f32 %v2936, %v3088
    %3090 = vdwg.mxu0
    %3091 = vst [vmem:[#allocation7] sm:$0xff] %v3038
    %3092 = vst [vmem:[#allocation7 + $0x8] sm:$0xff] %v3040
    %3093 = vst [vmem:[#allocation7 + $0x10] sm:$0xff] %v3045
    %3094 = vst [vmem:[#allocation7 + $0x18] sm:$0xff] %v3047
    %3095 = vst [vmem:[#allocation7 + $0x20] sm:$0xff] %v3052
    %3096 = vst [vmem:[#allocation7 + $0x28] sm:$0xff] %v3054
    %3097 = vst [vmem:[#allocation7 + $0x30] sm:$0xff] %v3059
    %3098 = vst [vmem:[#allocation7 + $0x38] sm:$0xff] %v3061
    %3099 = vst [vmem:[#allocation7 + $0x40] sm:$0xff] %v3066
    %3100 = vst [vmem:[#allocation7 + $0x48] sm:$0xff] %v3068
    %3101 = vst [vmem:[#allocation7 + $0x50] sm:$0xff] %v3073
    %3102 = vst [vmem:[#allocation7 + $0x58] sm:$0xff] %v3075
    %3103 = vst [vmem:[#allocation7 + $0x60] sm:$0xff] %v3080
    %3104 = vst [vmem:[#allocation7 + $0x68] sm:$0xff] %v3082
    %3105 = vst [vmem:[#allocation7 + $0x70] sm:$0xff] %v3087
    %3106 = vst [vmem:[#allocation7 + $0x78] sm:$0xff] %v3089
    // Predicated region
    $region22: #{tpu_custom_call.1} parent=1 // pred_check
      _
    $region23: #{tpu_custom_call.1} parent=1 // pred_check_branch
      %3108 = sbr.rel (0) target = $region25
    $region24: #{tpu_custom_call.1} parent=1 // pred_region
      %s3110 = ssub.s32 2048, 2048
      %3111 = vsyncadd [#allocation4], %s3110
      %s3112 = sshll.u32 [#allocation7], 4
      %s3113 = int_to_ptr.vmem [resolvable:$true] %s3112
      %3118 = dma.vmem_to_hbm [thread:$0]  %s3113, 2048, %s3, [#allocation4], 256, 256, 16
    $region25: #{tpu_custom_call.1} parent=1 // pred_fallthru
      _
    // Predicated region
    $region26: #{tpu_custom_call.1} parent=1 // pred_check
      _
    $region27: #{tpu_custom_call.1} parent=1 // pred_check_branch
      %3120 = sbr.rel (0) target = $region29
    $region28: #{tpu_custom_call.1} parent=1 // pred_region
      %3121 = dma.done [#allocation4], 2048
    $region29: #{tpu_custom_call.1} parent=1 // pred_fallthru
      _
    %3122 = vsyncpa [#allocation3], 1
    %3123 = vsyncpa [#allocation6], 1
    %3124 = vsyncpa [#allocation4], 1

</llo_original>
